<compile_context>
chip_gen: v6e
topology: v6e:2x2x1
jax: 0.10.0
libtpu: 0.0.40
codegen_flags: <defaults>
</compile_context>

<pallas_src>
import jax
import jax.numpy as jnp
from jax.experimental import pallas as pl
from jax.experimental.pallas import tpu as pltpu


# ----------------------------------------------------------------------------
# Small helpers
# ----------------------------------------------------------------------------
def _swish(v):
    # x * sigmoid(x).  sigmoid via exp (EUP) + approximate reciprocal (EUP)
    # instead of an exact divide: cheaper on v5e's single f32-only EUP slot.
    e = jnp.exp(jnp.minimum(-v, 60.0))          # clamp: no inf for huge -v
    return v * pl.reciprocal(1.0 + e, approx=True)


def _bf16_dot(a, w):
    # bf16 x bf16 matmul on the MXU, f32 accumulation.
    return jnp.dot(a.astype(jnp.bfloat16), w, preferred_element_type=jnp.float32)


def _ceil_to(n, m):
    return ((n + m - 1) // m) * m


def _pad2(a, r, c):
    return jnp.pad(a, ((0, r - a.shape[0]), (0, c - a.shape[1])))


def _pad3(a, r, c):
    return jnp.pad(a, ((0, 0), (0, r - a.shape[1]), (0, c - a.shape[2])))


# ----------------------------------------------------------------------------
# Kernel 1: per-edge input transforms (x_ji, x_kj -> down projection)
# ----------------------------------------------------------------------------
def _edge_in_kernel(x_ref, rbf_ref, w_jikj_ref, b_jikj_ref, w_rbf_ref,
                    w_down_ref, xji_ref, xkj_ref):
    Hp = x_ref.shape[1]
    # fused lin_ji / lin_kj : one [Hp, 2Hp] matmul, then split.
    y = _bf16_dot(x_ref[...], w_jikj_ref[...]) + b_jikj_ref[...]     # [TE, 2Hp]
    x_ji = _swish(y[:, :Hp])
    x_kj = _swish(y[:, Hp:])

    rbf_h = _bf16_dot(rbf_ref[...], w_rbf_ref[...])                  # [TE, Hp]
    x_kj = x_kj * rbf_h
    # NOTE: padded edge rows have rbf == 0 -> x_kj == 0 -> x_kj_down == 0,
    # which keeps the padded rows of the gather source exactly zero.
    x_kj_down = _swish(_bf16_dot(x_kj, w_down_ref[...]))             # [TE, Ip]

    xji_ref[...] = x_ji.astype(xji_ref.dtype)
    xkj_ref[...] = x_kj_down.astype(xkj_ref.dtype)


# ----------------------------------------------------------------------------
# Kernel 2a: gather x_kj_down[idx_kj] (E-tiled one-hot matmul) * sbf_h
# grid = (nT, nE): T parallel, E is the reduction (accumulated in scratch)
# ----------------------------------------------------------------------------
def _gather_kernel(idx_kj_ref, sbf_ref, xkj_ref, w_sbf_ref, y_ref, acc_ref):
    e = pl.program_id(1)

    @pl.when(e == 0)
    def _init():
        acc_ref[...] = jnp.zeros_like(acc_ref)

    tile_t = idx_kj_ref.shape[0]
    tile_e = xkj_ref.shape[0]
    e_off = e * tile_e
    # one_hot[tt, te] = (idx_kj[tt] == e_off + te); sentinel index Ep (padded
    # triplets) lies strictly outside every tile's range [e_off, e_off+tile_e).
    onehot = (jax.lax.broadcasted_iota(jnp.int32, (tile_t, tile_e), 1) + e_off
              == idx_kj_ref[...]).astype(jnp.bfloat16)               # [TT, TE]
    acc_ref[...] += jnp.dot(onehot, xkj_ref[...],
                            preferred_element_type=jnp.float32)      # [TT, Ip]

    @pl.when(e == pl.num_programs(1) - 1)
    def _fin():
        sbf_h = _bf16_dot(sbf_ref[...], w_sbf_ref[...])              # [TT, Ip]
        y_ref[...] = (acc_ref[...] * sbf_h).astype(y_ref.dtype)


# ----------------------------------------------------------------------------
# Kernel 2b: scatter-add over idx_ji (T-tiled one-hot matmul)
# grid = (nE, nT): E parallel, T is the reduction (accumulated in scratch)
# ----------------------------------------------------------------------------
def _scatter_kernel(idx_ji_ref, y_ref, agg_ref, acc_ref):
    t = pl.program_id(1)

    @pl.when(t == 0)
    def _init():
        acc_ref[...] = jnp.zeros_like(acc_ref)

    tile_e = acc_ref.shape[0]
    tile_t = y_ref.shape[0]
    e_off = pl.program_id(0) * tile_e
    # one_hot[te, tt] = (idx_ji[tt] == e_off + te); sentinel never matches.
    onehot = (jax.lax.broadcasted_iota(jnp.int32, (tile_e, tile_t), 0) + e_off
              == idx_ji_ref[...]).astype(jnp.bfloat16)               # [TE, TT]
    acc_ref[...] += jnp.dot(onehot, y_ref[...],
                            preferred_element_type=jnp.float32)      # [TE, Ip]

    @pl.when(t == pl.num_programs(1) - 1)
    def _fin():
        agg_ref[...] = acc_ref[...].astype(agg_ref.dtype)


# ----------------------------------------------------------------------------
# Kernel 3: up projection + residual layers + skip + residual layers
# ----------------------------------------------------------------------------
def _make_edge_out_kernel(num_before_skip, num_layers):
    def kernel(x_ref, xji_ref, agg_ref, w_up_ref, w_lin_ref, b_lin_ref,
               rw1_ref, rb1_ref, rw2_ref, rb2_ref, out_ref):
        def res_layer(h, i):
            t = _swish(_bf16_dot(h, rw1_ref[i]) + rb1_ref[i])
            t = _swish(_bf16_dot(t, rw2_ref[i]) + rb2_ref[i])
            return h + t

        h = xji_ref[...].astype(jnp.float32) + _swish(
            _bf16_dot(agg_ref[...], w_up_ref[...]))
        for i in range(num_before_skip):
            h = res_layer(h, i)
        h = _swish(_bf16_dot(h, w_lin_ref[...]) + b_lin_ref[...]) + x_ref[...]
        for i in range(num_before_skip, num_layers):
            h = res_layer(h, i)
        out_ref[...] = h

    return kernel


# ----------------------------------------------------------------------------
# Wrapper
# ----------------------------------------------------------------------------
def interaction_pp_block(params, x, rbf, sbf, idx_kj, idx_ji, num_before_skip,
                         tile_e=256, tile_t=256):
    # tile defaults target v6e/v7x (2x256x256 MXU).  For v5e use tile_t=128
    # (MXU is 4x128x128) and a larger tile_e for the HBM-bound edge kernels.
    E, H = x.shape
    T, S = sbf.shape
    R = rbf.shape[1]
    I = params["w_down"].shape[1]
    L = params["res_w1"].shape[0]

    LANE = 128
    SUB = 16                              # bf16 sublane packing multiple
    Hp = _ceil_to(H, LANE)
    Ip = _ceil_to(I, LANE)
    Rp = _ceil_to(R, SUB)                 # contraction dims NOT lane-padded
    Sp = _ceil_to(S, SUB)
    Ep = _ceil_to(E, tile_e)
    Tp = _ceil_to(T, tile_t)
    nE, nT = Ep // tile_e, Tp // tile_t

    bf16, f32 = jnp.bfloat16, jnp.float32

    # ---- fused / padded / bf16 weights (one-time layout plumbing) ----------
    w_jikj = jnp.concatenate(
        [_pad2(params["w_ji"], Hp, Hp), _pad2(params["w_kj"], Hp, Hp)],
        axis=1).astype(bf16)                                          # [Hp, 2Hp]
    b_jikj = jnp.concatenate(
        [_pad2(params["b_ji"], 1, Hp), _pad2(params["b_kj"], 1, Hp)],
        axis=1).astype(f32)                                           # [1, 2Hp]
    w_rbf = _pad2(params["w_rbf1"] @ params["w_rbf2"], Rp, Hp).astype(bf16)
    w_sbf = _pad2(params["w_sbf1"] @ params["w_sbf2"], Sp, Ip).astype(bf16)
    w_down = _pad2(params["w_down"], Hp, Ip).astype(bf16)
    w_up = _pad2(params["w_up"], Ip, Hp).astype(bf16)
    w_lin = _pad2(params["w_lin"], Hp, Hp).astype(bf16)
    b_lin = _pad2(params["b_lin"], 1, Hp).astype(f32)
    rw1 = _pad3(params["res_w1"], Hp, Hp).astype(bf16)                # [L,Hp,Hp]
    rb1 = _pad3(params["res_b1"], 1, Hp).astype(f32)                  # [L,1,Hp]
    rw2 = _pad3(params["res_w2"], Hp, Hp).astype(bf16)
    rb2 = _pad3(params["res_b2"], 1, Hp).astype(f32)

    # ---- padded activations / indices --------------------------------------
    x_p = _pad2(x, Ep, Hp)
    rbf_p = _pad2(rbf, Ep, Rp)            # zero rows -> zero x_kj_down rows
    sbf_p = _pad2(sbf, Tp, Sp)
    # Padded triplets get sentinel index Ep, strictly outside every E tile's
    # iota range [e*tile_e, (e+1)*tile_e) (those cover exactly [0, Ep)).
    idx_kj_p = jnp.full((Tp,), Ep, jnp.int32).at[:T].set(
        idx_kj.astype(jnp.int32)).reshape(Tp, 1)
    idx_ji_p = jnp.full((Tp,), Ep, jnp.int32).at[:T].set(
        idx_ji.astype(jnp.int32)).reshape(1, Tp)

    vmem_limit = 48 * 1024 * 1024     # safe on v7x's 64 MiB/TC; raise on v5e/v6e

    def _row(i):                      # row tile of the edge axis (1-D grids)
        return (i, 0)

    def _c2(*_):                      # weight / resident 2-D array
        return (0, 0)

    def _c3(*_):                      # weight / resident 3-D array
        return (0, 0, 0)

    # ---------------- kernel 1: per-edge input transforms -------------------
    cost1 = pl.CostEstimate(
        flops=2 * Ep * Hp * (2 * Hp) + 2 * Ep * Rp * Hp + 2 * Ep * Hp * Ip,
        transcendentals=Ep * (2 * Hp + Ip),
        bytes_accessed=4 * Ep * (Hp + Rp) + 2 * Ep * (Hp + Ip)
        + 2 * (Hp * 2 * Hp + Rp * Hp + Hp * Ip) + 4 * 2 * Hp,
    )
    x_ji, x_kj_down = pl.pallas_call(
        _edge_in_kernel,
        out_shape=(jax.ShapeDtypeStruct((Ep, Hp), bf16),
                   jax.ShapeDtypeStruct((Ep, Ip), bf16)),
        grid=(nE,),
        in_specs=[
            pl.BlockSpec((tile_e, Hp), _row),
            pl.BlockSpec((tile_e, Rp), _row),
            pl.BlockSpec((Hp, 2 * Hp), _c2),
            pl.BlockSpec((1, 2 * Hp), _c2),
            pl.BlockSpec((Rp, Hp), _c2),
            pl.BlockSpec((Hp, Ip), _c2),
        ],
        out_specs=[
            pl.BlockSpec((tile_e, Hp), _row),
            pl.BlockSpec((tile_e, Ip), _row),
        ],
        compiler_params=pltpu.CompilerParams(
            dimension_semantics=("parallel",), vmem_limit_bytes=vmem_limit),
        cost_estimate=cost1,
    )(x_p, rbf_p, w_jikj, b_jikj, w_rbf, w_down)

    # ---------------- kernel 2a: E-tiled gather * sbf_h ---------------------
    cost2a = pl.CostEstimate(
        flops=2 * Tp * Ep * Ip + 2 * Tp * Sp * Ip,
        transcendentals=0,
        bytes_accessed=4 * Tp + 4 * Tp * Sp + 2 * Ep * Ip * nT
        + 2 * Sp * Ip + 2 * Tp * Ip,
    )
    y = pl.pallas_call(
        _gather_kernel,
        out_shape=jax.ShapeDtypeStruct((Tp, Ip), bf16),
        grid=(nT, nE),
        in_specs=[
            pl.BlockSpec((tile_t, 1), lambda t, e: (t, 0)),    # idx_kj
            pl.BlockSpec((tile_t, Sp), lambda t, e: (t, 0)),   # sbf tile
            pl.BlockSpec((tile_e, Ip), lambda t, e: (e, 0)),   # x_kj_down tile
            pl.BlockSpec((Sp, Ip), _c2),                       # fused sbf weight
        ],
        out_specs=pl.BlockSpec((tile_t, Ip), lambda t, e: (t, 0)),
        scratch_shapes=[pltpu.VMEM((tile_t, Ip), f32)],
        compiler_params=pltpu.CompilerParams(
            dimension_semantics=("parallel", "arbitrary"),
            vmem_limit_bytes=vmem_limit),
        cost_estimate=cost2a,
    )(idx_kj_p, sbf_p, x_kj_down, w_sbf)

    # ---------------- kernel 2b: T-tiled scatter-add over idx_ji ------------
    cost2b = pl.CostEstimate(
        flops=2 * Tp * Ep * Ip,
        transcendentals=0,
        bytes_accessed=4 * Tp * nE + 2 * Tp * Ip * nE + 2 * Ep * Ip,
    )
    agg = pl.pallas_call(
        _scatter_kernel,
        out_shape=jax.ShapeDtypeStruct((Ep, Ip), bf16),
        grid=(nE, nT),
        in_specs=[
            pl.BlockSpec((1, tile_t), lambda e, t: (0, t)),    # idx_ji
            pl.BlockSpec((tile_t, Ip), lambda e, t: (t, 0)),   # y tile
        ],
        out_specs=pl.BlockSpec((tile_e, Ip), lambda e, t: (e, 0)),
        scratch_shapes=[pltpu.VMEM((tile_e, Ip), f32)],
        compiler_params=pltpu.CompilerParams(
            dimension_semantics=("parallel", "arbitrary"),
            vmem_limit_bytes=vmem_limit),
        cost_estimate=cost2b,
    )(idx_ji_p, y)

    # ---------------- kernel 3: up proj + residual stacks + skip ------------
    cost3 = pl.CostEstimate(
        flops=2 * Ep * (Ip * Hp + (1 + 2 * L) * Hp * Hp),
        transcendentals=Ep * Hp * (2 + 2 * L),
        bytes_accessed=4 * Ep * 2 * Hp + 2 * Ep * (Hp + Ip)
        + 2 * (Ip * Hp + Hp * Hp + 2 * L * Hp * Hp) + 4 * (1 + 2 * L) * Hp,
    )
    out_p = pl.pallas_call(
        _make_edge_out_kernel(num_before_skip, L),
        out_shape=jax.ShapeDtypeStruct((Ep, Hp), f32),
        grid=(nE,),
        in_specs=[
            pl.BlockSpec((tile_e, Hp), _row),         # x (f32, skip connection)
            pl.BlockSpec((tile_e, Hp), _row),         # x_ji (bf16)
            pl.BlockSpec((tile_e, Ip), _row),         # agg (bf16)
            pl.BlockSpec((Ip, Hp), _c2),
            pl.BlockSpec((Hp, Hp), _c2),
            pl.BlockSpec((1, Hp), _c2),
            pl.BlockSpec((L, Hp, Hp), _c3),
            pl.BlockSpec((L, 1, Hp), _c3),
            pl.BlockSpec((L, Hp, Hp), _c3),
            pl.BlockSpec((L, 1, Hp), _c3),
        ],
        out_specs=pl.BlockSpec((tile_e, Hp), _row),
        compiler_params=pltpu.CompilerParams(
            dimension_semantics=("parallel",), vmem_limit_bytes=vmem_limit),
        cost_estimate=cost3,
    )(x_p, x_ji, agg, w_up, w_lin, b_lin, rw1, rb1, rw2, rb2)

    return out_p[:E, :H]


# ----------------------------------------------------------------------------
# Deterministic parameter init (glorot-uniform stand-in for glorot_orthogonal)
# ----------------------------------------------------------------------------
def init_params(key, hidden, int_emb, basis, num_sph, num_rad, nb, na):
    n_res = nb + na
    keys = jax.random.split(key, 16 + 4 * n_res)

    def glorot(k, shape):  # shape = (in, out)
        lim = jnp.sqrt(6.0 / (shape[0] + shape[1]))
        return jax.random.uniform(k, shape, jnp.float32, -lim, lim)

    def bias(k, n):
        return jax.random.uniform(k, (1, n), jnp.float32, -0.05, 0.05)

    p = {
        "w_rbf1": glorot(keys[0], (num_rad, basis)),
        "w_rbf2": glorot(keys[1], (basis, hidden)),
        "w_sbf1": glorot(keys[2], (num_sph * num_rad, basis)),
        "w_sbf2": glorot(keys[3], (basis, int_emb)),
        "w_kj": glorot(keys[4], (hidden, hidden)),
        "b_kj": bias(keys[5], hidden),
        "w_ji": glorot(keys[6], (hidden, hidden)),
        "b_ji": bias(keys[7], hidden),
        "w_down": glorot(keys[8], (hidden, int_emb)),
        "w_up": glorot(keys[9], (int_emb, hidden)),
        "w_lin": glorot(keys[10], (hidden, hidden)),
        "b_lin": bias(keys[11], hidden),
    }
    rw1, rb1, rw2, rb2 = [], [], [], []
    for i in range(n_res):
        k0, k1, k2, k3 = keys[12 + 4 * i: 16 + 4 * i]
        rw1.append(glorot(k0, (hidden, hidden)))
        rb1.append(bias(k1, hidden))
        rw2.append(glorot(k2, (hidden, hidden)))
        rb2.append(bias(k3, hidden))
    p["res_w1"] = jnp.stack(rw1)          # [L, H, H]
    p["res_b1"] = jnp.stack(rb1)          # [L, 1, H]
    p["res_w2"] = jnp.stack(rw2)
    p["res_b2"] = jnp.stack(rb2)
    return p


# ----------------------------------------------------------------------------
# Pure-JAX f32 reference (mirrors the PyTorch forward)
# ----------------------------------------------------------------------------
def reference(params, x, rbf, sbf, idx_kj, idx_ji, num_before_skip):
    def swish(v):
        return v * jax.nn.sigmoid(v)

    E = x.shape[0]
    x_ji = swish(x @ params["w_ji"] + params["b_ji"])
    x_kj = swish(x @ params["w_kj"] + params["b_kj"])
    rbf_h = (rbf @ params["w_rbf1"]) @ params["w_rbf2"]
    x_kj = x_kj * rbf_h
    x_kj = swish(x_kj @ params["w_down"])
    sbf_h = (sbf @ params["w_sbf1"]) @ params["w_sbf2"]
    x_kj = x_kj[idx_kj] * sbf_h
    x_kj = jnp.zeros((E, x_kj.shape[1]), jnp.float32).at[idx_ji].add(x_kj)
    x_kj = swish(x_kj @ params["w_up"])
    h = x_ji + x_kj
    L = params["res_w1"].shape[0]
    for i in range(num_before_skip):
        t = swish(h @ params["res_w1"][i] + params["res_b1"][i])
        t = swish(t @ params["res_w2"][i] + params["res_b2"][i])
        h = h + t
    h = swish(h @ params["w_lin"] + params["b_lin"]) + x
    for i in range(num_before_skip, L):
        t = swish(h @ params["res_w1"][i] + params["res_b1"][i])
        t = swish(t @ params["res_w2"][i] + params["res_b2"][i])
        h = h + t
    return h


if __name__ == "__main__":
    # Small DimeNet++-style hyperparameters
    hidden_channels = 32
    int_emb_size = 16
    basis_emb_size = 8
    num_spherical = 4
    num_radial = 6
    num_before_skip = 1
    num_after_skip = 2

    E = 8    # number of edges (rows of x)
    T = 16   # number of triplets (rows of sbf)

    key = jax.random.PRNGKey(0)
    kp, kx, kr, ks, kkj, kji = jax.random.split(key, 6)

    params = init_params(kp, hidden_channels, int_emb_size, basis_emb_size,
                         num_spherical, num_radial, num_before_skip,
                         num_after_skip)

    x = jax.random.normal(kx, (E, hidden_channels), jnp.float32)
    rbf = jax.random.normal(kr, (E, num_radial), jnp.float32)
    sbf = jax.random.normal(ks, (T, num_spherical * num_radial), jnp.float32)
    idx_kj = jax.random.randint(kkj, (T,), 0, E, jnp.int32)
    idx_ji = jax.random.randint(kji, (T,), 0, E, jnp.int32)

    out = interaction_pp_block(params, x, rbf, sbf, idx_kj, idx_ji,
                               num_before_skip)
    out = jax.block_until_ready(out)

    ref = reference(params, x, rbf, sbf, idx_kj, idx_ji, num_before_skip)
    assert out.shape == (E, hidden_channels)

    # bf16 matmuls (f32 accumulation) vs f32 reference -> check relative L2.
    rel_err = jnp.linalg.norm(out - ref) / jnp.linalg.norm(ref)
    max_abs = jnp.max(jnp.abs(out - ref))
    assert rel_err < 3e-2, f"relative L2 error {rel_err}, max abs {max_abs}"

    print("KERNEL_OK")
</pallas_src>

<mosaic_0001>
module attributes {stable_mosaic.version = 11 : i64} {
  func.func @_edge_in_kernel(%arg0: i32, %arg1: memref<256x128xf32, #tpu.memory_space<vmem>>, %arg2: memref<256x16xf32, #tpu.memory_space<vmem>>, %arg3: memref<128x256xbf16, #tpu.memory_space<vmem>>, %arg4: memref<1x256xf32, #tpu.memory_space<vmem>>, %arg5: memref<16x128xbf16, #tpu.memory_space<vmem>>, %arg6: memref<128x128xbf16, #tpu.memory_space<vmem>>, %arg7: memref<256x128xbf16, #tpu.memory_space<vmem>>, %arg8: memref<256x128xbf16, #tpu.memory_space<vmem>>) attributes {dimension_semantics = [#tpu.dimension_semantics<parallel>], iteration_bounds = array<i64: 1>, scalar_prefetch = 0 : i64, scratch_operands = 0 : i64, tpu.core_type = #tpu.core_type<tc>, window_params = [{transform_indices = @transform_0, window_bounds = array<i64: 256, 128>}, {transform_indices = @transform_1, window_bounds = array<i64: 256, 16>}, {pipeline_mode = #tpu.pipeline_mode<synchronous>, transform_indices = @transform_2, window_bounds = array<i64: 128, 256>}, {pipeline_mode = #tpu.pipeline_mode<synchronous>, transform_indices = @transform_3, window_bounds = array<i64: 1, 256>}, {pipeline_mode = #tpu.pipeline_mode<synchronous>, transform_indices = @transform_4, window_bounds = array<i64: 16, 128>}, {pipeline_mode = #tpu.pipeline_mode<synchronous>, transform_indices = @transform_5, window_bounds = array<i64: 128, 128>}, {transform_indices = @transform_6, window_bounds = array<i64: 256, 128>}, {transform_indices = @transform_7, window_bounds = array<i64: 256, 128>}]} {
    %c0 = arith.constant 0 : index
    %c0_0 = arith.constant 0 : index
    %0 = vector.load %arg1[%c0, %c0_0] : memref<256x128xf32, #tpu.memory_space<vmem>>, vector<256x128xf32>
    %c0_1 = arith.constant 0 : index
    %c0_2 = arith.constant 0 : index
    %1 = vector.load %arg3[%c0_1, %c0_2] : memref<128x256xbf16, #tpu.memory_space<vmem>>, vector<128x256xbf16>
    %2 = arith.truncf %0 : vector<256x128xf32> to vector<256x128xbf16>
    %cst = arith.constant dense<0.000000e+00> : vector<256x256xf32>
    %3 = tpu.matmul %2, %1, %cst {dimension_numbers = #tpu.dot_dimension_numbers<[1], [0], [0], [1], [0, 0, 1, 1], [], []>} : vector<256x128xbf16>, vector<128x256xbf16>, vector<256x256xf32> -> vector<256x256xf32>
    %c0_3 = arith.constant 0 : index
    %c0_4 = arith.constant 0 : index
    %4 = vector.load %arg4[%c0_3, %c0_4] : memref<1x256xf32, #tpu.memory_space<vmem>>, vector<1x256xf32>
    %5 = vector.broadcast %4 : vector<1x256xf32> to vector<256x256xf32>
    %6 = arith.addf %3, %5 : vector<256x256xf32>
    %7 = vector.extract_strided_slice %6 {offsets = [0, 0], sizes = [256, 128], strides = [1, 1]} : vector<256x256xf32> to vector<256x128xf32>
    %cst_5 = arith.constant 0.000000e+00 : f32
    %8 = vector.broadcast %cst_5 : f32 to vector<256x128xf32>
    %9 = arith.subf %8, %7 : vector<256x128xf32>
    %cst_6 = arith.constant 6.000000e+01 : f32
    %10 = vector.broadcast %cst_6 : f32 to vector<256x128xf32>
    %11 = arith.minimumf %9, %10 : vector<256x128xf32>
    %12 = math.exp %11 : vector<256x128xf32>
    %cst_7 = arith.constant 1.000000e+00 : f32
    %13 = vector.broadcast %cst_7 : f32 to vector<256x128xf32>
    %14 = arith.addf %13, %12 : vector<256x128xf32>
    %15 = tpu.reciprocal %14 {approx = true} : vector<256x128xf32> -> vector<256x128xf32>
    %16 = arith.mulf %7, %15 : vector<256x128xf32>
    %17 = vector.extract_strided_slice %6 {offsets = [0, 128], sizes = [256, 128], strides = [1, 1]} : vector<256x256xf32> to vector<256x128xf32>
    %cst_8 = arith.constant 0.000000e+00 : f32
    %18 = vector.broadcast %cst_8 : f32 to vector<256x128xf32>
    %19 = arith.subf %18, %17 : vector<256x128xf32>
    %cst_9 = arith.constant 6.000000e+01 : f32
    %20 = vector.broadcast %cst_9 : f32 to vector<256x128xf32>
    %21 = arith.minimumf %19, %20 : vector<256x128xf32>
    %22 = math.exp %21 : vector<256x128xf32>
    %cst_10 = arith.constant 1.000000e+00 : f32
    %23 = vector.broadcast %cst_10 : f32 to vector<256x128xf32>
    %24 = arith.addf %23, %22 : vector<256x128xf32>
    %25 = tpu.reciprocal %24 {approx = true} : vector<256x128xf32> -> vector<256x128xf32>
    %26 = arith.mulf %17, %25 : vector<256x128xf32>
    %c0_11 = arith.constant 0 : index
    %c0_12 = arith.constant 0 : index
    %27 = vector.load %arg2[%c0_11, %c0_12] : memref<256x16xf32, #tpu.memory_space<vmem>>, vector<256x16xf32>
    %c0_13 = arith.constant 0 : index
    %c0_14 = arith.constant 0 : index
    %28 = vector.load %arg5[%c0_13, %c0_14] : memref<16x128xbf16, #tpu.memory_space<vmem>>, vector<16x128xbf16>
    %29 = arith.truncf %27 : vector<256x16xf32> to vector<256x16xbf16>
    %cst_15 = arith.constant dense<0.000000e+00> : vector<256x128xf32>
    %30 = tpu.matmul %29, %28, %cst_15 {dimension_numbers = #tpu.dot_dimension_numbers<[1], [0], [0], [1], [0, 0, 1, 1], [], []>} : vector<256x16xbf16>, vector<16x128xbf16>, vector<256x128xf32> -> vector<256x128xf32>
    %31 = arith.mulf %26, %30 : vector<256x128xf32>
    %c0_16 = arith.constant 0 : index
    %c0_17 = arith.constant 0 : index
    %32 = vector.load %arg6[%c0_16, %c0_17] : memref<128x128xbf16, #tpu.memory_space<vmem>>, vector<128x128xbf16>
    %33 = arith.truncf %31 : vector<256x128xf32> to vector<256x128xbf16>
    %cst_18 = arith.constant dense<0.000000e+00> : vector<256x128xf32>
    %34 = tpu.matmul %33, %32, %cst_18 {dimension_numbers = #tpu.dot_dimension_numbers<[1], [0], [0], [1], [0, 0, 1, 1], [], []>} : vector<256x128xbf16>, vector<128x128xbf16>, vector<256x128xf32> -> vector<256x128xf32>
    %cst_19 = arith.constant 0.000000e+00 : f32
    %35 = vector.broadcast %cst_19 : f32 to vector<256x128xf32>
    %36 = arith.subf %35, %34 : vector<256x128xf32>
    %cst_20 = arith.constant 6.000000e+01 : f32
    %37 = vector.broadcast %cst_20 : f32 to vector<256x128xf32>
    %38 = arith.minimumf %36, %37 : vector<256x128xf32>
    %39 = math.exp %38 : vector<256x128xf32>
    %cst_21 = arith.constant 1.000000e+00 : f32
    %40 = vector.broadcast %cst_21 : f32 to vector<256x128xf32>
    %41 = arith.addf %40, %39 : vector<256x128xf32>
    %42 = tpu.reciprocal %41 {approx = true} : vector<256x128xf32> -> vector<256x128xf32>
    %43 = arith.mulf %34, %42 : vector<256x128xf32>
    %44 = arith.truncf %16 : vector<256x128xf32> to vector<256x128xbf16>
    %c0_22 = arith.constant 0 : index
    %c0_23 = arith.constant 0 : index
    %45 = vector.load %arg7[%c0_22, %c0_23] : memref<256x128xbf16, #tpu.memory_space<vmem>>, vector<256x128xbf16>
    tpu.vector_store %arg7[%c0_22, %c0_23], %44 {strides = array<i32>} : memref<256x128xbf16, #tpu.memory_space<vmem>>, vector<256x128xbf16>,
    %46 = arith.truncf %43 : vector<256x128xf32> to vector<256x128xbf16>
    %c0_24 = arith.constant 0 : index
    %c0_25 = arith.constant 0 : index
    %47 = vector.load %arg8[%c0_24, %c0_25] : memref<256x128xbf16, #tpu.memory_space<vmem>>, vector<256x128xbf16>
    tpu.vector_store %arg8[%c0_24, %c0_25], %46 {strides = array<i32>} : memref<256x128xbf16, #tpu.memory_space<vmem>>, vector<256x128xbf16>,
    return
  }
  func.func @transform_0(%arg0: i32) -> (i32, i32) {
    %c0_i32 = arith.constant 0 : i32
    %c0_i32_0 = arith.constant 0 : i32
    return %arg0, %c0_i32 : i32, i32
  }
  func.func @transform_1(%arg0: i32) -> (i32, i32) {
    %c0_i32 = arith.constant 0 : i32
    %c0_i32_0 = arith.constant 0 : i32
    return %arg0, %c0_i32 : i32, i32
  }
  func.func @transform_2(%arg0: i32) -> (i32, i32) {
    %c0_i32 = arith.constant 0 : i32
    %c0_i32_0 = arith.constant 0 : i32
    %c0_i32_1 = arith.constant 0 : i32
    return %c0_i32, %c0_i32_0 : i32, i32
  }
  func.func @transform_3(%arg0: i32) -> (i32, i32) {
    %c0_i32 = arith.constant 0 : i32
    %c0_i32_0 = arith.constant 0 : i32
    %c0_i32_1 = arith.constant 0 : i32
    return %c0_i32, %c0_i32_0 : i32, i32
  }
  func.func @transform_4(%arg0: i32) -> (i32, i32) {
    %c0_i32 = arith.constant 0 : i32
    %c0_i32_0 = arith.constant 0 : i32
    %c0_i32_1 = arith.constant 0 : i32
    return %c0_i32, %c0_i32_0 : i32, i32
  }
  func.func @transform_5(%arg0: i32) -> (i32, i32) {
    %c0_i32 = arith.constant 0 : i32
    %c0_i32_0 = arith.constant 0 : i32
    %c0_i32_1 = arith.constant 0 : i32
    return %c0_i32, %c0_i32_0 : i32, i32
  }
  func.func @transform_6(%arg0: i32) -> (i32, i32) {
    %c0_i32 = arith.constant 0 : i32
    %c0_i32_0 = arith.constant 0 : i32
    return %arg0, %c0_i32 : i32, i32
  }
  func.func @transform_7(%arg0: i32) -> (i32, i32) {
    %c0_i32 = arith.constant 0 : i32
    %c0_i32_0 = arith.constant 0 : i32
    return %arg0, %c0_i32 : i32, i32
  }
}

</mosaic_0001>

<llo_original>
// kernel: tpu_custom_call.1
$region0: #{tpu_custom_call.1}
  #allocation0 [shape = 'u32[]', space=smem, size = 0x4, offset = 0x4, fixed_abs, tag = 'smem constant byte address 0x4 - core index']
  #allocation1 [shape = 'u32[144,128]{1,0:T(1,128)}', space=vmem, size = 0x12000, scoped, tag = 'internal scratch']
  %s0 = inlined_call_operand.vmem [shape: f32[256,128], index: 0, kind: input, shape index: {}]
  %s1 = inlined_call_operand.vmem [shape: f32[256,16], index: 1, kind: input, shape index: {}]
  %s2 = inlined_call_operand.hbm [shape: bf16[128,256], index: 2, kind: input, shape index: {}]
  %s3 = inlined_call_operand.vmem [shape: f32[1,256], index: 3, kind: input, shape index: {}]
  %s4 = inlined_call_operand.vmem [shape: bf16[16,128], index: 4, kind: input, shape index: {}]
  %s5 = inlined_call_operand.hbm [shape: bf16[128,128], index: 5, kind: input, shape index: {}]
  %s6 = inlined_call_operand.hbm [shape: bf16[256,128], index: 6, kind: output, shape index: {0}]
  %s7 = inlined_call_operand.hbm [shape: bf16[256,128], index: 7, kind: output, shape index: {1}]
  %8 = xla_tuple %s6, %s7
  %s9 = sld [smem:[#allocation0]]
  $region50: #{tpu_custom_call.1} parent=0
    _
  %s11 = ssub.s32 1, %s9
  %s12 = scalar_select 0, %s11, %s9
  $region1: #{tpu_custom_call.1} parent=0
    #allocation2 [shape = 'u8[65536]{0}', space=vmem, size = 0x10000, scoped, tag = 'input window, operand 2, single buffered']
    #allocation3 [shape = 's32[1]{0}', space=sflag, size = 0x4, scoped, tag = 'scoped memory for tpu_custom_call.1']
    #allocation4 [shape = 's32[1]{0}', space=sflag, size = 0x4, scoped, tag = 'scoped memory for tpu_custom_call.1']
    #allocation5 [shape = 'u8[32768]{0}', space=vmem, size = 0x8000, scoped, tag = 'input window, operand 5, single buffered']
    #allocation6 [shape = 's32[1]{0}', space=sflag, size = 0x4, scoped, tag = 'scoped memory for tpu_custom_call.1']
    #allocation7 [shape = 'u8[65536]{0}', space=vmem, size = 0x10000, scoped, tag = 'output window, operand 0, single buffered']
    #allocation8 [shape = 'u8[65536]{0}', space=vmem, size = 0x10000, scoped, tag = 'output window, operand 1, single buffered']
    #allocation9 [shape = 's32[1]{0}', space=sflag, size = 0x4, scoped, tag = 'scoped memory for tpu_custom_call.1']
    %13 = vsyncpa [#allocation3], 0
    %14 = vsyncpa [#allocation6], 0
    %15 = vsyncpa [#allocation4], 0
    %16 = vsyncpa [#allocation9], 0
    // Predicated region
    $region2: #{tpu_custom_call.1} parent=1 // pred_check
      _
    $region3: #{tpu_custom_call.1} parent=1 // pred_check_branch
      %18 = sbr.rel (0) target = $region5
    $region4: #{tpu_custom_call.1} parent=1 // pred_region
      _
    $region5: #{tpu_custom_call.1} parent=1 // pred_fallthru
      _
    // Predicated region
    $region6: #{tpu_custom_call.1} parent=1 // pred_check
      _
    $region7: #{tpu_custom_call.1} parent=1 // pred_check_branch
      %20 = sbr.rel (0) target = $region9
    $region8: #{tpu_custom_call.1} parent=1 // pred_region
      _
    $region9: #{tpu_custom_call.1} parent=1 // pred_fallthru
      _
    // Predicated region
    $region10: #{tpu_custom_call.1} parent=1 // pred_check
      _
    $region11: #{tpu_custom_call.1} parent=1 // pred_check_branch
      %22 = sbr.rel (0) target = $region13
    $region12: #{tpu_custom_call.1} parent=1 // pred_region
      %s24 = ssub.s32 2048, 2048
      %25 = vsyncadd [#allocation3], %s24
      %s26 = sshll.u32 [#allocation2], 4
      %s27 = int_to_ptr.vmem [resolvable:$true] %s26
      %32 = dma.hbm_to_vmem [thread:$0]  %s2, 2048, %s27, [#allocation3], 128, 128, 8
    $region13: #{tpu_custom_call.1} parent=1 // pred_fallthru
      _
    // Predicated region
    $region14: #{tpu_custom_call.1} parent=1 // pred_check
      _
    $region15: #{tpu_custom_call.1} parent=1 // pred_check_branch
      %34 = sbr.rel (0) target = $region17
    $region16: #{tpu_custom_call.1} parent=1 // pred_region
      _
    $region17: #{tpu_custom_call.1} parent=1 // pred_fallthru
      _
    // Predicated region
    $region18: #{tpu_custom_call.1} parent=1 // pred_check
      _
    $region19: #{tpu_custom_call.1} parent=1 // pred_check_branch
      %36 = sbr.rel (0) target = $region21
    $region20: #{tpu_custom_call.1} parent=1 // pred_region
      _
    $region21: #{tpu_custom_call.1} parent=1 // pred_fallthru
      _
    // Predicated region
    $region22: #{tpu_custom_call.1} parent=1 // pred_check
      _
    $region23: #{tpu_custom_call.1} parent=1 // pred_check_branch
      %38 = sbr.rel (0) target = $region25
    $region24: #{tpu_custom_call.1} parent=1 // pred_region
      %s40 = ssub.s32 1024, 1024
      %41 = vsyncadd [#allocation6], %s40
      %s42 = sshll.u32 [#allocation5], 4
      %s43 = int_to_ptr.vmem [resolvable:$true] %s42
      %48 = dma.hbm_to_vmem [thread:$0]  %s5, 1024, %s43, [#allocation6], 64, 64, 4
    $region25: #{tpu_custom_call.1} parent=1 // pred_fallthru
      _
    // Predicated region
    $region26: #{tpu_custom_call.1} parent=1 // pred_check
      _
    $region27: #{tpu_custom_call.1} parent=1 // pred_check_branch
      %50 = sbr.rel (0) target = $region29
    $region28: #{tpu_custom_call.1} parent=1 // pred_region
      %51 = dma.done [#allocation3], 2048
    $region29: #{tpu_custom_call.1} parent=1 // pred_fallthru
      _
    // Predicated region
    $region30: #{tpu_custom_call.1} parent=1 // pred_check
      _
    $region31: #{tpu_custom_call.1} parent=1 // pred_check_branch
      %53 = sbr.rel (0) target = $region33
    $region32: #{tpu_custom_call.1} parent=1 // pred_region
      %54 = dma.done [#allocation6], 1024
    $region33: #{tpu_custom_call.1} parent=1 // pred_fallthru
      _
    %v56 = vld [vmem:[%s0] sm:$0xff]
    %v57 = vld [vmem:[%s0 + $0x8] sm:$0xff]
    %v58 = vld [vmem:[%s0 + $0x10] sm:$0xff]
    %v59 = vld [vmem:[%s0 + $0x18] sm:$0xff]
    %v60 = vld [vmem:[%s0 + $0x20] sm:$0xff]
    %v61 = vld [vmem:[%s0 + $0x28] sm:$0xff]
    %v62 = vld [vmem:[%s0 + $0x30] sm:$0xff]
    %v63 = vld [vmem:[%s0 + $0x38] sm:$0xff]
    %v64 = vld [vmem:[%s0 + $0x40] sm:$0xff]
    %v65 = vld [vmem:[%s0 + $0x48] sm:$0xff]
    %v66 = vld [vmem:[%s0 + $0x50] sm:$0xff]
    %v67 = vld [vmem:[%s0 + $0x58] sm:$0xff]
    %v68 = vld [vmem:[%s0 + $0x60] sm:$0xff]
    %v69 = vld [vmem:[%s0 + $0x68] sm:$0xff]
    %v70 = vld [vmem:[%s0 + $0x70] sm:$0xff]
    %v71 = vld [vmem:[%s0 + $0x78] sm:$0xff]
    %v72 = vld [vmem:[%s0 + $0x80] sm:$0xff]
    %v73 = vld [vmem:[%s0 + $0x88] sm:$0xff]
    %v74 = vld [vmem:[%s0 + $0x90] sm:$0xff]
    %v75 = vld [vmem:[%s0 + $0x98] sm:$0xff]
    %v76 = vld [vmem:[%s0 + $0xa0] sm:$0xff]
    %v77 = vld [vmem:[%s0 + $0xa8] sm:$0xff]
    %v78 = vld [vmem:[%s0 + $0xb0] sm:$0xff]
    %v79 = vld [vmem:[%s0 + $0xb8] sm:$0xff]
    %v80 = vld [vmem:[%s0 + $0xc0] sm:$0xff]
    %v81 = vld [vmem:[%s0 + $0xc8] sm:$0xff]
    %v82 = vld [vmem:[%s0 + $0xd0] sm:$0xff]
    %v83 = vld [vmem:[%s0 + $0xd8] sm:$0xff]
    %v84 = vld [vmem:[%s0 + $0xe0] sm:$0xff]
    %v85 = vld [vmem:[%s0 + $0xe8] sm:$0xff]
    %v86 = vld [vmem:[%s0 + $0xf0] sm:$0xff]
    %v87 = vld [vmem:[%s0 + $0xf8] sm:$0xff]
    %v88 = vld [vmem:[#allocation2] sm:$0xff]
    %v89 = vld [vmem:[#allocation2 + $0x8] sm:$0xff]
    %v90 = vld [vmem:[#allocation2 + $0x10] sm:$0xff]
    %v91 = vld [vmem:[#allocation2 + $0x18] sm:$0xff]
    %v92 = vld [vmem:[#allocation2 + $0x20] sm:$0xff]
    %v93 = vld [vmem:[#allocation2 + $0x28] sm:$0xff]
    %v94 = vld [vmem:[#allocation2 + $0x30] sm:$0xff]
    %v95 = vld [vmem:[#allocation2 + $0x38] sm:$0xff]
    %v96 = vld [vmem:[#allocation2 + $0x40] sm:$0xff]
    %v97 = vld [vmem:[#allocation2 + $0x48] sm:$0xff]
    %v98 = vld [vmem:[#allocation2 + $0x50] sm:$0xff]
    %v99 = vld [vmem:[#allocation2 + $0x58] sm:$0xff]
    %v100 = vld [vmem:[#allocation2 + $0x60] sm:$0xff]
    %v101 = vld [vmem:[#allocation2 + $0x68] sm:$0xff]
    %v102 = vld [vmem:[#allocation2 + $0x70] sm:$0xff]
    %v103 = vld [vmem:[#allocation2 + $0x78] sm:$0xff]
    %v104 = vpack.c.bf16 %v57, %v56
    %v105 = vpack.c.bf16 %v59, %v58
    %v106 = vpack.c.bf16 %v61, %v60
    %v107 = vpack.c.bf16 %v63, %v62
    %v108 = vpack.c.bf16 %v65, %v64
    %v109 = vpack.c.bf16 %v67, %v66
    %v110 = vpack.c.bf16 %v69, %v68
    %v111 = vpack.c.bf16 %v71, %v70
    %v112 = vpack.c.bf16 %v73, %v72
    %v113 = vpack.c.bf16 %v75, %v74
    %v114 = vpack.c.bf16 %v77, %v76
    %v115 = vpack.c.bf16 %v79, %v78
    %v116 = vpack.c.bf16 %v81, %v80
    %v117 = vpack.c.bf16 %v83, %v82
    %v118 = vpack.c.bf16 %v85, %v84
    %v119 = vpack.c.bf16 %v87, %v86
    %v120 = vld [vmem:[%s3] sm:$0x3]
    %v122 = vlaneseq
    %v123 = vshrl.u32 %v122, 7
    %v124 = vsub.s32 0, %v123
    %v125 = vrot.slane %v120, %v124
    %v126 = vlaneseq
    %v127 = vshrl.u32 %v126, 7
    %v128 = vsub.s32 1, %v127
    %v129 = vrot.slane %v120, %v128
    %v148 = vunpack.c.l.b16 %v88
    %v149 = vunpack.c.h.b16 %v88
    %v150 = vunpack.c.l.b16 %v89
    %v151 = vunpack.c.h.b16 %v89
    %v152 = vunpack.c.l.b16 %v90
    %v153 = vunpack.c.h.b16 %v90
    %v154 = vunpack.c.l.b16 %v91
    %v155 = vunpack.c.h.b16 %v91
    %v156 = vunpack.c.l.b16 %v92
    %v157 = vunpack.c.h.b16 %v92
    %v158 = vunpack.c.l.b16 %v93
    %v159 = vunpack.c.h.b16 %v93
    %v160 = vunpack.c.l.b16 %v94
    %v161 = vunpack.c.h.b16 %v94
    %v162 = vunpack.c.l.b16 %v95
    %v163 = vunpack.c.h.b16 %v95
    %v164 = vunpack.c.l.b16 %v96
    %v165 = vunpack.c.h.b16 %v96
    %v166 = vunpack.c.l.b16 %v97
    %v167 = vunpack.c.h.b16 %v97
    %v168 = vunpack.c.l.b16 %v98
    %v169 = vunpack.c.h.b16 %v98
    %v170 = vunpack.c.l.b16 %v99
    %v171 = vunpack.c.h.b16 %v99
    %v172 = vunpack.c.l.b16 %v100
    %v173 = vunpack.c.h.b16 %v100
    %v174 = vunpack.c.l.b16 %v101
    %v175 = vunpack.c.h.b16 %v101
    %v176 = vunpack.c.l.b16 %v102
    %v177 = vunpack.c.h.b16 %v102
    %v178 = vunpack.c.l.b16 %v103
    %v179 = vunpack.c.h.b16 %v103
    %v180 = vpack.c.b16 %v150, %v148
    %v181 = vpack.c.b16 %v151, %v149
    %v182 = vpack.c.b16 %v154, %v152
    %v183 = vpack.c.b16 %v155, %v153
    %v184 = vpack.c.b16 %v158, %v156
    %v185 = vpack.c.b16 %v159, %v157
    %v186 = vpack.c.b16 %v162, %v160
    %v187 = vpack.c.b16 %v163, %v161
    %v188 = vpack.c.b16 %v166, %v164
    %v189 = vpack.c.b16 %v167, %v165
    %v190 = vpack.c.b16 %v170, %v168
    %v191 = vpack.c.b16 %v171, %v169
    %v192 = vpack.c.b16 %v174, %v172
    %v193 = vpack.c.b16 %v175, %v173
    %v194 = vpack.c.b16 %v178, %v176
    %v195 = vpack.c.b16 %v179, %v177
    %212 = vmatprep.subr.bf16.mxu0 %v195
    %213 = vmatpush1.bf16.msra.mxu0 %v194
    %214 = vmatprep.subr.bf16.mxu0 %v193
    %215 = vmatpush1.bf16.msra.mxu0 %v192
    %216 = vmatprep.subr.bf16.mxu0 %v191
    %217 = vmatpush1.bf16.msra.mxu0 %v190
    %218 = vmatprep.subr.bf16.mxu0 %v189
    %219 = vmatpush1.bf16.msra.mxu0 %v188
    %220 = vmatprep.subr.bf16.mxu0 %v187
    %221 = vmatpush1.bf16.msra.mxu0 %v186
    %222 = vmatprep.subr.bf16.mxu0 %v185
    %223 = vmatpush1.bf16.msra.mxu0 %v184
    %224 = vmatprep.subr.bf16.mxu0 %v183
    %225 = vmatpush1.bf16.msra.mxu0 %v182
    %226 = vmatprep.subr.bf16.mxu0 %v181
    %227 = vmatpush1.bf16.msra.mxu0 %v180
    %228 = vmatprep.subr.bf16.mxu0 0
    %229 = vmatpush2.bf16.msra.mxu0 0
    %230 = vmatprep.subr.bf16.mxu0 0
    %231 = vmatpush2.bf16.msra.mxu0 0
    %232 = vmatprep.subr.bf16.mxu0 0
    %233 = vmatpush2.bf16.msra.mxu0 0
    %234 = vmatprep.subr.bf16.mxu0 0
    %235 = vmatpush2.bf16.msra.mxu0 0
    %236 = vmatprep.subr.bf16.mxu0 0
    %237 = vmatpush2.bf16.msra.mxu0 0
    %238 = vmatprep.subr.bf16.mxu0 0
    %239 = vmatpush2.bf16.msra.mxu0 0
    %240 = vmatprep.subr.bf16.mxu0 0
    %241 = vmatpush2.bf16.msra.mxu0 0
    %242 = vmatprep.subr.bf16.mxu0 0
    %243 = vmatpush2.bf16.msra.mxu0 0
    %244 = vmatprep.mubr.bf16.mxu0 0
    %245 = vmatmul.mubr.bf16.gmra.mxu0 %v104
    %v246 = vpop.f32.mrf.mxu0
    %v247 = vadd.f32 %v125, %v246
    %v248 = vpop.f32.mrf.mxu0
    %v249 = vadd.f32 %v129, %v248
    %v250 = vpop.f32.mrf.mxu0
    %v251 = vadd.f32 %v125, %v250
    %v252 = vpop.f32.mrf.mxu0
    %v253 = vadd.f32 %v129, %v252
    %254 = vmatprep.mubr.bf16.mxu0 0
    %255 = vmatmul.mubr.bf16.gmra.mxu0 %v105
    %v256 = vpop.f32.mrf.mxu0
    %v257 = vadd.f32 %v125, %v256
    %v258 = vpop.f32.mrf.mxu0
    %v259 = vadd.f32 %v129, %v258
    %v260 = vpop.f32.mrf.mxu0
    %v261 = vadd.f32 %v125, %v260
    %v262 = vpop.f32.mrf.mxu0
    %v263 = vadd.f32 %v129, %v262
    %264 = vmatprep.mubr.bf16.mxu0 0
    %265 = vmatmul.mubr.bf16.gmra.mxu0 %v106
    %v266 = vpop.f32.mrf.mxu0
    %v267 = vadd.f32 %v125, %v266
    %v268 = vpop.f32.mrf.mxu0
    %v269 = vadd.f32 %v129, %v268
    %v270 = vpop.f32.mrf.mxu0
    %v271 = vadd.f32 %v125, %v270
    %v272 = vpop.f32.mrf.mxu0
    %v273 = vadd.f32 %v129, %v272
    %274 = vmatprep.mubr.bf16.mxu0 0
    %275 = vmatmul.mubr.bf16.gmra.mxu0 %v107
    %v276 = vpop.f32.mrf.mxu0
    %v277 = vadd.f32 %v125, %v276
    %v278 = vpop.f32.mrf.mxu0
    %v279 = vadd.f32 %v129, %v278
    %v280 = vpop.f32.mrf.mxu0
    %v281 = vadd.f32 %v125, %v280
    %v282 = vpop.f32.mrf.mxu0
    %v283 = vadd.f32 %v129, %v282
    %284 = vmatprep.mubr.bf16.mxu0 0
    %285 = vmatmul.mubr.bf16.gmra.mxu0 %v108
    %v286 = vpop.f32.mrf.mxu0
    %v287 = vadd.f32 %v125, %v286
    %v288 = vpop.f32.mrf.mxu0
    %v289 = vadd.f32 %v129, %v288
    %v290 = vpop.f32.mrf.mxu0
    %v291 = vadd.f32 %v125, %v290
    %v292 = vpop.f32.mrf.mxu0
    %v293 = vadd.f32 %v129, %v292
    %294 = vmatprep.mubr.bf16.mxu0 0
    %295 = vmatmul.mubr.bf16.gmra.mxu0 %v109
    %v296 = vpop.f32.mrf.mxu0
    %v297 = vadd.f32 %v125, %v296
    %v298 = vpop.f32.mrf.mxu0
    %v299 = vadd.f32 %v129, %v298
    %v300 = vpop.f32.mrf.mxu0
    %v301 = vadd.f32 %v125, %v300
    %v302 = vpop.f32.mrf.mxu0
    %v303 = vadd.f32 %v129, %v302
    %304 = vmatprep.mubr.bf16.mxu0 0
    %305 = vmatmul.mubr.bf16.gmra.mxu0 %v110
    %v306 = vpop.f32.mrf.mxu0
    %v307 = vadd.f32 %v125, %v306
    %v308 = vpop.f32.mrf.mxu0
    %v309 = vadd.f32 %v129, %v308
    %v310 = vpop.f32.mrf.mxu0
    %v311 = vadd.f32 %v125, %v310
    %v312 = vpop.f32.mrf.mxu0
    %v313 = vadd.f32 %v129, %v312
    %314 = vmatprep.mubr.bf16.mxu0 0
    %315 = vmatmul.mubr.bf16.gmra.mxu0 %v111
    %v316 = vpop.f32.mrf.mxu0
    %v317 = vadd.f32 %v125, %v316
    %v318 = vpop.f32.mrf.mxu0
    %v319 = vadd.f32 %v129, %v318
    %v320 = vpop.f32.mrf.mxu0
    %v321 = vadd.f32 %v125, %v320
    %v322 = vpop.f32.mrf.mxu0
    %v323 = vadd.f32 %v129, %v322
    %324 = vmatprep.mubr.bf16.mxu0 0
    %325 = vmatmul.mubr.bf16.gmra.mxu0 %v112
    %v326 = vpop.f32.mrf.mxu0
    %v327 = vadd.f32 %v125, %v326
    %v328 = vpop.f32.mrf.mxu0
    %v329 = vadd.f32 %v129, %v328
    %v330 = vpop.f32.mrf.mxu0
    %v331 = vadd.f32 %v125, %v330
    %v332 = vpop.f32.mrf.mxu0
    %v333 = vadd.f32 %v129, %v332
    %334 = vmatprep.mubr.bf16.mxu0 0
    %335 = vmatmul.mubr.bf16.gmra.mxu0 %v113
    %v336 = vpop.f32.mrf.mxu0
    %v337 = vadd.f32 %v125, %v336
    %v338 = vpop.f32.mrf.mxu0
    %v339 = vadd.f32 %v129, %v338
    %v340 = vpop.f32.mrf.mxu0
    %v341 = vadd.f32 %v125, %v340
    %v342 = vpop.f32.mrf.mxu0
    %v343 = vadd.f32 %v129, %v342
    %344 = vmatprep.mubr.bf16.mxu0 0
    %345 = vmatmul.mubr.bf16.gmra.mxu0 %v114
    %v346 = vpop.f32.mrf.mxu0
    %v347 = vadd.f32 %v125, %v346
    %v348 = vpop.f32.mrf.mxu0
    %v349 = vadd.f32 %v129, %v348
    %v350 = vpop.f32.mrf.mxu0
    %v351 = vadd.f32 %v125, %v350
    %v352 = vpop.f32.mrf.mxu0
    %v353 = vadd.f32 %v129, %v352
    %354 = vmatprep.mubr.bf16.mxu0 0
    %355 = vmatmul.mubr.bf16.gmra.mxu0 %v115
    %v356 = vpop.f32.mrf.mxu0
    %v357 = vadd.f32 %v125, %v356
    %v358 = vpop.f32.mrf.mxu0
    %v359 = vadd.f32 %v129, %v358
    %v360 = vpop.f32.mrf.mxu0
    %v361 = vadd.f32 %v125, %v360
    %v362 = vpop.f32.mrf.mxu0
    %v363 = vadd.f32 %v129, %v362
    %364 = vmatprep.mubr.bf16.mxu0 0
    %365 = vmatmul.mubr.bf16.gmra.mxu0 %v116
    %v366 = vpop.f32.mrf.mxu0
    %v367 = vadd.f32 %v125, %v366
    %v368 = vpop.f32.mrf.mxu0
    %v369 = vadd.f32 %v129, %v368
    %v370 = vpop.f32.mrf.mxu0
    %v371 = vadd.f32 %v125, %v370
    %v372 = vpop.f32.mrf.mxu0
    %v373 = vadd.f32 %v129, %v372
    %374 = vmatprep.mubr.bf16.mxu0 0
    %375 = vmatmul.mubr.bf16.gmra.mxu0 %v117
    %v376 = vpop.f32.mrf.mxu0
    %v377 = vadd.f32 %v125, %v376
    %v378 = vpop.f32.mrf.mxu0
    %v379 = vadd.f32 %v129, %v378
    %v380 = vpop.f32.mrf.mxu0
    %v381 = vadd.f32 %v125, %v380
    %v382 = vpop.f32.mrf.mxu0
    %v383 = vadd.f32 %v129, %v382
    %384 = vmatprep.mubr.bf16.mxu0 0
    %385 = vmatmul.mubr.bf16.gmra.mxu0 %v118
    %v386 = vpop.f32.mrf.mxu0
    %v387 = vadd.f32 %v125, %v386
    %v388 = vpop.f32.mrf.mxu0
    %v389 = vadd.f32 %v129, %v388
    %v390 = vpop.f32.mrf.mxu0
    %v391 = vadd.f32 %v125, %v390
    %v392 = vpop.f32.mrf.mxu0
    %v393 = vadd.f32 %v129, %v392
    %394 = vmatprep.mubr.bf16.mxu0 0
    %395 = vmatmul.mubr.bf16.gmra.mxu0 %v119
    %v396 = vpop.f32.mrf.mxu0
    %v397 = vadd.f32 %v125, %v396
    %v398 = vpop.f32.mrf.mxu0
    %v399 = vadd.f32 %v129, %v398
    %v400 = vpop.f32.mrf.mxu0
    %v401 = vadd.f32 %v125, %v400
    %v402 = vpop.f32.mrf.mxu0
    %v403 = vadd.f32 %v129, %v402
    %404 = vdwg.mxu0
    %v405 = vsub.f32 0.0, %v247
    %v406 = vsub.f32 0.0, %v251
    %v407 = vsub.f32 0.0, %v257
    %v408 = vsub.f32 0.0, %v261
    %v409 = vsub.f32 0.0, %v267
    %v410 = vsub.f32 0.0, %v271
    %v411 = vsub.f32 0.0, %v277
    %v412 = vsub.f32 0.0, %v281
    %v413 = vsub.f32 0.0, %v287
    %v414 = vsub.f32 0.0, %v291
    %v415 = vsub.f32 0.0, %v297
    %v416 = vsub.f32 0.0, %v301
    %v417 = vsub.f32 0.0, %v307
    %v418 = vsub.f32 0.0, %v311
    %v419 = vsub.f32 0.0, %v317
    %v420 = vsub.f32 0.0, %v321
    %v421 = vsub.f32 0.0, %v327
    %v422 = vsub.f32 0.0, %v331
    %v423 = vsub.f32 0.0, %v337
    %v424 = vsub.f32 0.0, %v341
    %v425 = vsub.f32 0.0, %v347
    %v426 = vsub.f32 0.0, %v351
    %v427 = vsub.f32 0.0, %v357
    %v428 = vsub.f32 0.0, %v361
    %v429 = vsub.f32 0.0, %v367
    %v430 = vsub.f32 0.0, %v371
    %v431 = vsub.f32 0.0, %v377
    %v432 = vsub.f32 0.0, %v381
    %v433 = vsub.f32 0.0, %v387
    %v434 = vsub.f32 0.0, %v391
    %v435 = vsub.f32 0.0, %v397
    %v436 = vsub.f32 0.0, %v401
    %v437 = vmin.f32 %v405, 60.0
    %v438 = vmin.f32 %v406, 60.0
    %v439 = vmin.f32 %v407, 60.0
    %v440 = vmin.f32 %v408, 60.0
    %v441 = vmin.f32 %v409, 60.0
    %v442 = vmin.f32 %v410, 60.0
    %v443 = vmin.f32 %v411, 60.0
    %v444 = vmin.f32 %v412, 60.0
    %v445 = vmin.f32 %v413, 60.0
    %v446 = vmin.f32 %v414, 60.0
    %v447 = vmin.f32 %v415, 60.0
    %v448 = vmin.f32 %v416, 60.0
    %v449 = vmin.f32 %v417, 60.0
    %v450 = vmin.f32 %v418, 60.0
    %v451 = vmin.f32 %v419, 60.0
    %v452 = vmin.f32 %v420, 60.0
    %v453 = vmin.f32 %v421, 60.0
    %v454 = vmin.f32 %v422, 60.0
    %v455 = vmin.f32 %v423, 60.0
    %v456 = vmin.f32 %v424, 60.0
    %v457 = vmin.f32 %v425, 60.0
    %v458 = vmin.f32 %v426, 60.0
    %v459 = vmin.f32 %v427, 60.0
    %v460 = vmin.f32 %v428, 60.0
    %v461 = vmin.f32 %v429, 60.0
    %v462 = vmin.f32 %v430, 60.0
    %v463 = vmin.f32 %v431, 60.0
    %v464 = vmin.f32 %v432, 60.0
    %v465 = vmin.f32 %v433, 60.0
    %v466 = vmin.f32 %v434, 60.0
    %v467 = vmin.f32 %v435, 60.0
    %v468 = vmin.f32 %v436, 60.0
    %v469 = vmul.f32 %v437, 1.442695
    %v470 = vpow.pop %v469
    %v471 = vmul.f32 %v438, 1.442695
    %v472 = vpow.pop %v471
    %v473 = vmul.f32 %v439, 1.442695
    %v474 = vpow.pop %v473
    %v475 = vmul.f32 %v440, 1.442695
    %v476 = vpow.pop %v475
    %v477 = vmul.f32 %v441, 1.442695
    %v478 = vpow.pop %v477
    %v479 = vmul.f32 %v442, 1.442695
    %v480 = vpow.pop %v479
    %v481 = vmul.f32 %v443, 1.442695
    %v482 = vpow.pop %v481
    %v483 = vmul.f32 %v444, 1.442695
    %v484 = vpow.pop %v483
    %v485 = vmul.f32 %v445, 1.442695
    %v486 = vpow.pop %v485
    %v487 = vmul.f32 %v446, 1.442695
    %v488 = vpow.pop %v487
    %v489 = vmul.f32 %v447, 1.442695
    %v490 = vpow.pop %v489
    %v491 = vmul.f32 %v448, 1.442695
    %v492 = vpow.pop %v491
    %v493 = vmul.f32 %v449, 1.442695
    %v494 = vpow.pop %v493
    %v495 = vmul.f32 %v450, 1.442695
    %v496 = vpow.pop %v495
    %v497 = vmul.f32 %v451, 1.442695
    %v498 = vpow.pop %v497
    %v499 = vmul.f32 %v452, 1.442695
    %v500 = vpow.pop %v499
    %v501 = vmul.f32 %v453, 1.442695
    %v502 = vpow.pop %v501
    %v503 = vmul.f32 %v454, 1.442695
    %v504 = vpow.pop %v503
    %v505 = vmul.f32 %v455, 1.442695
    %v506 = vpow.pop %v505
    %v507 = vmul.f32 %v456, 1.442695
    %v508 = vpow.pop %v507
    %v509 = vmul.f32 %v457, 1.442695
    %v510 = vpow.pop %v509
    %v511 = vmul.f32 %v458, 1.442695
    %v512 = vpow.pop %v511
    %v513 = vmul.f32 %v459, 1.442695
    %v514 = vpow.pop %v513
    %v515 = vmul.f32 %v460, 1.442695
    %v516 = vpow.pop %v515
    %v517 = vmul.f32 %v461, 1.442695
    %v518 = vpow.pop %v517
    %v519 = vmul.f32 %v462, 1.442695
    %v520 = vpow.pop %v519
    %v521 = vmul.f32 %v463, 1.442695
    %v522 = vpow.pop %v521
    %v523 = vmul.f32 %v464, 1.442695
    %v524 = vpow.pop %v523
    %v525 = vmul.f32 %v465, 1.442695
    %v526 = vpow.pop %v525
    %v527 = vmul.f32 %v466, 1.442695
    %v528 = vpow.pop %v527
    %v529 = vmul.f32 %v467, 1.442695
    %v530 = vpow.pop %v529
    %v531 = vmul.f32 %v468, 1.442695
    %v532 = vpow.pop %v531
    %v533 = vadd.f32 %v470, 1.0
    %v534 = vadd.f32 %v472, 1.0
    %v535 = vadd.f32 %v474, 1.0
    %v536 = vadd.f32 %v476, 1.0
    %v537 = vadd.f32 %v478, 1.0
    %v538 = vadd.f32 %v480, 1.0
    %v539 = vadd.f32 %v482, 1.0
    %v540 = vadd.f32 %v484, 1.0
    %v541 = vadd.f32 %v486, 1.0
    %v542 = vadd.f32 %v488, 1.0
    %v543 = vadd.f32 %v490, 1.0
    %v544 = vadd.f32 %v492, 1.0
    %v545 = vadd.f32 %v494, 1.0
    %v546 = vadd.f32 %v496, 1.0
    %v547 = vadd.f32 %v498, 1.0
    %v548 = vadd.f32 %v500, 1.0
    %v549 = vadd.f32 %v502, 1.0
    %v550 = vadd.f32 %v504, 1.0
    %v551 = vadd.f32 %v506, 1.0
    %v552 = vadd.f32 %v508, 1.0
    %v553 = vadd.f32 %v510, 1.0
    %v554 = vadd.f32 %v512, 1.0
    %v555 = vadd.f32 %v514, 1.0
    %v556 = vadd.f32 %v516, 1.0
    %v557 = vadd.f32 %v518, 1.0
    %v558 = vadd.f32 %v520, 1.0
    %v559 = vadd.f32 %v522, 1.0
    %v560 = vadd.f32 %v524, 1.0
    %v561 = vadd.f32 %v526, 1.0
    %v562 = vadd.f32 %v528, 1.0
    %v563 = vadd.f32 %v530, 1.0
    %v564 = vadd.f32 %v532, 1.0
    %v565 = vrcp.pop %v533
    %v566 = vrcp.pop %v534
    %v567 = vrcp.pop %v535
    %v568 = vrcp.pop %v536
    %v569 = vrcp.pop %v537
    %v570 = vrcp.pop %v538
    %v571 = vrcp.pop %v539
    %v572 = vrcp.pop %v540
    %v573 = vrcp.pop %v541
    %v574 = vrcp.pop %v542
    %v575 = vrcp.pop %v543
    %v576 = vrcp.pop %v544
    %v577 = vrcp.pop %v545
    %v578 = vrcp.pop %v546
    %v579 = vrcp.pop %v547
    %v580 = vrcp.pop %v548
    %v581 = vrcp.pop %v549
    %v582 = vrcp.pop %v550
    %v583 = vrcp.pop %v551
    %v584 = vrcp.pop %v552
    %v585 = vrcp.pop %v553
    %v586 = vrcp.pop %v554
    %v587 = vrcp.pop %v555
    %v588 = vrcp.pop %v556
    %v589 = vrcp.pop %v557
    %v590 = vrcp.pop %v558
    %v591 = vrcp.pop %v559
    %v592 = vrcp.pop %v560
    %v593 = vrcp.pop %v561
    %v594 = vrcp.pop %v562
    %v595 = vrcp.pop %v563
    %v596 = vrcp.pop %v564
    %v597 = vmul.f32 %v247, %v565
    %v598 = vmul.f32 %v251, %v566
    %v599 = vmul.f32 %v257, %v567
    %v600 = vmul.f32 %v261, %v568
    %v601 = vmul.f32 %v267, %v569
    %v602 = vmul.f32 %v271, %v570
    %v603 = vmul.f32 %v277, %v571
    %v604 = vmul.f32 %v281, %v572
    %v605 = vmul.f32 %v287, %v573
    %v606 = vmul.f32 %v291, %v574
    %v607 = vmul.f32 %v297, %v575
    %v608 = vmul.f32 %v301, %v576
    %v609 = vmul.f32 %v307, %v577
    %v610 = vmul.f32 %v311, %v578
    %v611 = vmul.f32 %v317, %v579
    %v612 = vmul.f32 %v321, %v580
    %v613 = vmul.f32 %v327, %v581
    %v614 = vmul.f32 %v331, %v582
    %v615 = vmul.f32 %v337, %v583
    %v616 = vmul.f32 %v341, %v584
    %v617 = vmul.f32 %v347, %v585
    %v618 = vmul.f32 %v351, %v586
    %v619 = vmul.f32 %v357, %v587
    %v620 = vmul.f32 %v361, %v588
    %v621 = vmul.f32 %v367, %v589
    %v622 = vmul.f32 %v371, %v590
    %v623 = vmul.f32 %v377, %v591
    %v624 = vmul.f32 %v381, %v592
    %v625 = vmul.f32 %v387, %v593
    %v626 = vmul.f32 %v391, %v594
    %v627 = vmul.f32 %v397, %v595
    %v628 = vmul.f32 %v401, %v596
    %v629 = vsub.f32 0.0, %v249
    %v630 = vsub.f32 0.0, %v253
    %v631 = vsub.f32 0.0, %v259
    %v632 = vsub.f32 0.0, %v263
    %v633 = vsub.f32 0.0, %v269
    %v634 = vsub.f32 0.0, %v273
    %v635 = vsub.f32 0.0, %v279
    %v636 = vsub.f32 0.0, %v283
    %v637 = vsub.f32 0.0, %v289
    %v638 = vsub.f32 0.0, %v293
    %v639 = vsub.f32 0.0, %v299
    %v640 = vsub.f32 0.0, %v303
    %v641 = vsub.f32 0.0, %v309
    %v642 = vsub.f32 0.0, %v313
    %v643 = vsub.f32 0.0, %v319
    %v644 = vsub.f32 0.0, %v323
    %v645 = vsub.f32 0.0, %v329
    %v646 = vsub.f32 0.0, %v333
    %v647 = vsub.f32 0.0, %v339
    %v648 = vsub.f32 0.0, %v343
    %v649 = vsub.f32 0.0, %v349
    %v650 = vsub.f32 0.0, %v353
    %v651 = vsub.f32 0.0, %v359
    %v652 = vsub.f32 0.0, %v363
    %v653 = vsub.f32 0.0, %v369
    %v654 = vsub.f32 0.0, %v373
    %v655 = vsub.f32 0.0, %v379
    %v656 = vsub.f32 0.0, %v383
    %v657 = vsub.f32 0.0, %v389
    %v658 = vsub.f32 0.0, %v393
    %v659 = vsub.f32 0.0, %v399
    %v660 = vsub.f32 0.0, %v403
    %v661 = vmin.f32 %v629, 60.0
    %v662 = vmin.f32 %v630, 60.0
    %v663 = vmin.f32 %v631, 60.0
    %v664 = vmin.f32 %v632, 60.0
    %v665 = vmin.f32 %v633, 60.0
    %v666 = vmin.f32 %v634, 60.0
    %v667 = vmin.f32 %v635, 60.0
    %v668 = vmin.f32 %v636, 60.0
    %v669 = vmin.f32 %v637, 60.0
    %v670 = vmin.f32 %v638, 60.0
    %v671 = vmin.f32 %v639, 60.0
    %v672 = vmin.f32 %v640, 60.0
    %v673 = vmin.f32 %v641, 60.0
    %v674 = vmin.f32 %v642, 60.0
    %v675 = vmin.f32 %v643, 60.0
    %v676 = vmin.f32 %v644, 60.0
    %v677 = vmin.f32 %v645, 60.0
    %v678 = vmin.f32 %v646, 60.0
    %v679 = vmin.f32 %v647, 60.0
    %v680 = vmin.f32 %v648, 60.0
    %v681 = vmin.f32 %v649, 60.0
    %v682 = vmin.f32 %v650, 60.0
    %v683 = vmin.f32 %v651, 60.0
    %v684 = vmin.f32 %v652, 60.0
    %v685 = vmin.f32 %v653, 60.0
    %v686 = vmin.f32 %v654, 60.0
    %v687 = vmin.f32 %v655, 60.0
    %v688 = vmin.f32 %v656, 60.0
    %v689 = vmin.f32 %v657, 60.0
    %v690 = vmin.f32 %v658, 60.0
    %v691 = vmin.f32 %v659, 60.0
    %v692 = vmin.f32 %v660, 60.0
    %v693 = vmul.f32 %v661, 1.442695
    %v694 = vpow.pop %v693
    %v695 = vmul.f32 %v662, 1.442695
    %v696 = vpow.pop %v695
    %v697 = vmul.f32 %v663, 1.442695
    %v698 = vpow.pop %v697
    %v699 = vmul.f32 %v664, 1.442695
    %v700 = vpow.pop %v699
    %v701 = vmul.f32 %v665, 1.442695
    %v702 = vpow.pop %v701
    %v703 = vmul.f32 %v666, 1.442695
    %v704 = vpow.pop %v703
    %v705 = vmul.f32 %v667, 1.442695
    %v706 = vpow.pop %v705
    %v707 = vmul.f32 %v668, 1.442695
    %v708 = vpow.pop %v707
    %v709 = vmul.f32 %v669, 1.442695
    %v710 = vpow.pop %v709
    %v711 = vmul.f32 %v670, 1.442695
    %v712 = vpow.pop %v711
    %v713 = vmul.f32 %v671, 1.442695
    %v714 = vpow.pop %v713
    %v715 = vmul.f32 %v672, 1.442695
    %v716 = vpow.pop %v715
    %v717 = vmul.f32 %v673, 1.442695
    %v718 = vpow.pop %v717
    %v719 = vmul.f32 %v674, 1.442695
    %v720 = vpow.pop %v719
    %v721 = vmul.f32 %v675, 1.442695
    %v722 = vpow.pop %v721
    %v723 = vmul.f32 %v676, 1.442695
    %v724 = vpow.pop %v723
    %v725 = vmul.f32 %v677, 1.442695
    %v726 = vpow.pop %v725
    %v727 = vmul.f32 %v678, 1.442695
    %v728 = vpow.pop %v727
    %v729 = vmul.f32 %v679, 1.442695
    %v730 = vpow.pop %v729
    %v731 = vmul.f32 %v680, 1.442695
    %v732 = vpow.pop %v731
    %v733 = vmul.f32 %v681, 1.442695
    %v734 = vpow.pop %v733
    %v735 = vmul.f32 %v682, 1.442695
    %v736 = vpow.pop %v735
    %v737 = vmul.f32 %v683, 1.442695
    %v738 = vpow.pop %v737
    %v739 = vmul.f32 %v684, 1.442695
    %v740 = vpow.pop %v739
    %v741 = vmul.f32 %v685, 1.442695
    %v742 = vpow.pop %v741
    %v743 = vmul.f32 %v686, 1.442695
    %v744 = vpow.pop %v743
    %v745 = vmul.f32 %v687, 1.442695
    %v746 = vpow.pop %v745
    %v747 = vmul.f32 %v688, 1.442695
    %v748 = vpow.pop %v747
    %v749 = vmul.f32 %v689, 1.442695
    %v750 = vpow.pop %v749
    %v751 = vmul.f32 %v690, 1.442695
    %v752 = vpow.pop %v751
    %v753 = vmul.f32 %v691, 1.442695
    %v754 = vpow.pop %v753
    %v755 = vmul.f32 %v692, 1.442695
    %v756 = vpow.pop %v755
    %v757 = vadd.f32 %v694, 1.0
    %v758 = vadd.f32 %v696, 1.0
    %v759 = vadd.f32 %v698, 1.0
    %v760 = vadd.f32 %v700, 1.0
    %v761 = vadd.f32 %v702, 1.0
    %v762 = vadd.f32 %v704, 1.0
    %v763 = vadd.f32 %v706, 1.0
    %v764 = vadd.f32 %v708, 1.0
    %v765 = vadd.f32 %v710, 1.0
    %v766 = vadd.f32 %v712, 1.0
    %v767 = vadd.f32 %v714, 1.0
    %v768 = vadd.f32 %v716, 1.0
    %v769 = vadd.f32 %v718, 1.0
    %v770 = vadd.f32 %v720, 1.0
    %v771 = vadd.f32 %v722, 1.0
    %v772 = vadd.f32 %v724, 1.0
    %v773 = vadd.f32 %v726, 1.0
    %v774 = vadd.f32 %v728, 1.0
    %v775 = vadd.f32 %v730, 1.0
    %v776 = vadd.f32 %v732, 1.0
    %v777 = vadd.f32 %v734, 1.0
    %v778 = vadd.f32 %v736, 1.0
    %v779 = vadd.f32 %v738, 1.0
    %v780 = vadd.f32 %v740, 1.0
    %v781 = vadd.f32 %v742, 1.0
    %v782 = vadd.f32 %v744, 1.0
    %v783 = vadd.f32 %v746, 1.0
    %v784 = vadd.f32 %v748, 1.0
    %v785 = vadd.f32 %v750, 1.0
    %v786 = vadd.f32 %v752, 1.0
    %v787 = vadd.f32 %v754, 1.0
    %v788 = vadd.f32 %v756, 1.0
    %v789 = vrcp.pop %v757
    %v790 = vrcp.pop %v758
    %v791 = vrcp.pop %v759
    %v792 = vrcp.pop %v760
    %v793 = vrcp.pop %v761
    %v794 = vrcp.pop %v762
    %v795 = vrcp.pop %v763
    %v796 = vrcp.pop %v764
    %v797 = vrcp.pop %v765
    %v798 = vrcp.pop %v766
    %v799 = vrcp.pop %v767
    %v800 = vrcp.pop %v768
    %v801 = vrcp.pop %v769
    %v802 = vrcp.pop %v770
    %v803 = vrcp.pop %v771
    %v804 = vrcp.pop %v772
    %v805 = vrcp.pop %v773
    %v806 = vrcp.pop %v774
    %v807 = vrcp.pop %v775
    %v808 = vrcp.pop %v776
    %v809 = vrcp.pop %v777
    %v810 = vrcp.pop %v778
    %v811 = vrcp.pop %v779
    %v812 = vrcp.pop %v780
    %v813 = vrcp.pop %v781
    %v814 = vrcp.pop %v782
    %v815 = vrcp.pop %v783
    %v816 = vrcp.pop %v784
    %v817 = vrcp.pop %v785
    %v818 = vrcp.pop %v786
    %v819 = vrcp.pop %v787
    %v820 = vrcp.pop %v788
    %v821 = vmul.f32 %v249, %v789
    %v822 = vmul.f32 %v253, %v790
    %v823 = vmul.f32 %v259, %v791
    %v824 = vmul.f32 %v263, %v792
    %v825 = vmul.f32 %v269, %v793
    %v826 = vmul.f32 %v273, %v794
    %v827 = vmul.f32 %v279, %v795
    %v828 = vmul.f32 %v283, %v796
    %v829 = vmul.f32 %v289, %v797
    %v830 = vmul.f32 %v293, %v798
    %v831 = vmul.f32 %v299, %v799
    %v832 = vmul.f32 %v303, %v800
    %v833 = vmul.f32 %v309, %v801
    %v834 = vmul.f32 %v313, %v802
    %v835 = vmul.f32 %v319, %v803
    %v836 = vmul.f32 %v323, %v804
    %v837 = vmul.f32 %v329, %v805
    %v838 = vmul.f32 %v333, %v806
    %v839 = vmul.f32 %v339, %v807
    %v840 = vmul.f32 %v343, %v808
    %v841 = vmul.f32 %v349, %v809
    %v842 = vmul.f32 %v353, %v810
    %v843 = vmul.f32 %v359, %v811
    %v844 = vmul.f32 %v363, %v812
    %v845 = vmul.f32 %v369, %v813
    %v846 = vmul.f32 %v373, %v814
    %v847 = vmul.f32 %v379, %v815
    %v848 = vmul.f32 %v383, %v816
    %v849 = vmul.f32 %v389, %v817
    %v850 = vmul.f32 %v393, %v818
    %v851 = vmul.f32 %v399, %v819
    %v852 = vmul.f32 %v403, %v820
    %v853 = vld [vmem:[%s1] sm:$0xff]
    %v854 = vld [vmem:[%s1 + $0x8] sm:$0xff]
    %v855 = vld [vmem:[%s1 + $0x10] sm:$0xff]
    %v856 = vld [vmem:[%s1 + $0x18] sm:$0xff]
    %v857 = vld [vmem:[%s1 + $0x20] sm:$0xff]
    %v858 = vld [vmem:[%s1 + $0x28] sm:$0xff]
    %v859 = vld [vmem:[%s1 + $0x30] sm:$0xff]
    %v860 = vld [vmem:[%s1 + $0x38] sm:$0xff]
    %v861 = vld [vmem:[%s1 + $0x40] sm:$0xff]
    %v862 = vld [vmem:[%s1 + $0x48] sm:$0xff]
    %v863 = vld [vmem:[%s1 + $0x50] sm:$0xff]
    %v864 = vld [vmem:[%s1 + $0x58] sm:$0xff]
    %v865 = vld [vmem:[%s1 + $0x60] sm:$0xff]
    %v866 = vld [vmem:[%s1 + $0x68] sm:$0xff]
    %v867 = vld [vmem:[%s1 + $0x70] sm:$0xff]
    %v868 = vld [vmem:[%s1 + $0x78] sm:$0xff]
    %v869 = vld [vmem:[%s1 + $0x80] sm:$0xff]
    %v870 = vld [vmem:[%s1 + $0x88] sm:$0xff]
    %v871 = vld [vmem:[%s1 + $0x90] sm:$0xff]
    %v872 = vld [vmem:[%s1 + $0x98] sm:$0xff]
    %v873 = vld [vmem:[%s1 + $0xa0] sm:$0xff]
    %v874 = vld [vmem:[%s1 + $0xa8] sm:$0xff]
    %v875 = vld [vmem:[%s1 + $0xb0] sm:$0xff]
    %v876 = vld [vmem:[%s1 + $0xb8] sm:$0xff]
    %v877 = vld [vmem:[%s1 + $0xc0] sm:$0xff]
    %v878 = vld [vmem:[%s1 + $0xc8] sm:$0xff]
    %v879 = vld [vmem:[%s1 + $0xd0] sm:$0xff]
    %v880 = vld [vmem:[%s1 + $0xd8] sm:$0xff]
    %v881 = vld [vmem:[%s1 + $0xe0] sm:$0xff]
    %v882 = vld [vmem:[%s1 + $0xe8] sm:$0xff]
    %v883 = vld [vmem:[%s1 + $0xf0] sm:$0xff]
    %v884 = vld [vmem:[%s1 + $0xf8] sm:$0xff]
    %v885 = vld [vmem:[%s4] sm:$0xf]
    %v886 = vld [vmem:[%s4 + $0x4] sm:$0xf]
    %v887 = vpack.c.bf16 %v854, %v853
    %v888 = vpack.c.bf16 %v856, %v855
    %v889 = vpack.c.bf16 %v858, %v857
    %v890 = vpack.c.bf16 %v860, %v859
    %v891 = vpack.c.bf16 %v862, %v861
    %v892 = vpack.c.bf16 %v864, %v863
    %v893 = vpack.c.bf16 %v866, %v865
    %v894 = vpack.c.bf16 %v868, %v867
    %v895 = vpack.c.bf16 %v870, %v869
    %v896 = vpack.c.bf16 %v872, %v871
    %v897 = vpack.c.bf16 %v874, %v873
    %v898 = vpack.c.bf16 %v876, %v875
    %v899 = vpack.c.bf16 %v878, %v877
    %v900 = vpack.c.bf16 %v880, %v879
    %v901 = vpack.c.bf16 %v882, %v881
    %v902 = vpack.c.bf16 %v884, %v883
    %v905 = vunpack.c.l.b16 %v885
    %v906 = vunpack.c.l.b16 %v886
    %v907 = vpack.c.b16 %v906, %v905
    %vm909 = vcmask 130048
    %v911 = vsel %vm909, %v887, 0
    %v914 = vsel %vm909, %v888, 0
    %v917 = vsel %vm909, %v889, 0
    %v920 = vsel %vm909, %v890, 0
    %v923 = vsel %vm909, %v891, 0
    %v926 = vsel %vm909, %v892, 0
    %v929 = vsel %vm909, %v893, 0
    %v932 = vsel %vm909, %v894, 0
    %v935 = vsel %vm909, %v895, 0
    %v938 = vsel %vm909, %v896, 0
    %v941 = vsel %vm909, %v897, 0
    %v944 = vsel %vm909, %v898, 0
    %v947 = vsel %vm909, %v899, 0
    %v950 = vsel %vm909, %v900, 0
    %v953 = vsel %vm909, %v901, 0
    %v956 = vsel %vm909, %v902, 0
    %958 = vmatprep.subr.bf16.mxu0 0
    %959 = vmatpush1.bf16.msra.mxu0 0
    %960 = vmatprep.subr.bf16.mxu0 0
    %961 = vmatpush1.bf16.msra.mxu0 0
    %962 = vmatprep.subr.bf16.mxu0 0
    %963 = vmatpush1.bf16.msra.mxu0 0
    %964 = vmatprep.subr.bf16.mxu0 0
    %965 = vmatpush1.bf16.msra.mxu0 0
    %966 = vmatprep.subr.bf16.mxu0 0
    %967 = vmatpush1.bf16.msra.mxu0 0
    %968 = vmatprep.subr.bf16.mxu0 0
    %969 = vmatpush1.bf16.msra.mxu0 0
    %970 = vmatprep.subr.bf16.mxu0 0
    %971 = vmatpush1.bf16.msra.mxu0 0
    %972 = vmatprep.subr.bf16.mxu0 0
    %973 = vmatpush1.bf16.msra.mxu0 %v907
    %974 = vmatprep.subr.bf16.mxu0 0
    %975 = vmatpush2.bf16.msra.mxu0 0
    %976 = vmatprep.subr.bf16.mxu0 0
    %977 = vmatpush2.bf16.msra.mxu0 0
    %978 = vmatprep.subr.bf16.mxu0 0
    %979 = vmatpush2.bf16.msra.mxu0 0
    %980 = vmatprep.subr.bf16.mxu0 0
    %981 = vmatpush2.bf16.msra.mxu0 0
    %982 = vmatprep.subr.bf16.mxu0 0
    %983 = vmatpush2.bf16.msra.mxu0 0
    %984 = vmatprep.subr.bf16.mxu0 0
    %985 = vmatpush2.bf16.msra.mxu0 0
    %986 = vmatprep.subr.bf16.mxu0 0
    %987 = vmatpush2.bf16.msra.mxu0 0
    %988 = vmatprep.subr.bf16.mxu0 0
    %989 = vmatpush2.bf16.msra.mxu0 0
    %990 = vmatprep.mubr.bf16.mxu0 0
    %991 = vmatmul.mubr.bf16.gmra.mxu0 %v911
    %v992 = vpop.f32.mrf.mxu0
    %v993 = vadd.f32 0.0, %v992
    %v994 = vpop.f32.mrf.mxu0
    %v995 = vpop.f32.mrf.mxu0
    %v996 = vadd.f32 0.0, %v995
    %v997 = vpop.f32.mrf.mxu0
    %998 = vmatprep.mubr.bf16.mxu0 0
    %999 = vmatmul.mubr.bf16.gmra.mxu0 %v914
    %v1000 = vpop.f32.mrf.mxu0
    %v1001 = vadd.f32 0.0, %v1000
    %v1002 = vpop.f32.mrf.mxu0
    %v1003 = vpop.f32.mrf.mxu0
    %v1004 = vadd.f32 0.0, %v1003
    %v1005 = vpop.f32.mrf.mxu0
    %1006 = vmatprep.mubr.bf16.mxu0 0
    %1007 = vmatmul.mubr.bf16.gmra.mxu0 %v917
    %v1008 = vpop.f32.mrf.mxu0
    %v1009 = vadd.f32 0.0, %v1008
    %v1010 = vpop.f32.mrf.mxu0
    %v1011 = vpop.f32.mrf.mxu0
    %v1012 = vadd.f32 0.0, %v1011
    %v1013 = vpop.f32.mrf.mxu0
    %1014 = vmatprep.mubr.bf16.mxu0 0
    %1015 = vmatmul.mubr.bf16.gmra.mxu0 %v920
    %v1016 = vpop.f32.mrf.mxu0
    %v1017 = vadd.f32 0.0, %v1016
    %v1018 = vpop.f32.mrf.mxu0
    %v1019 = vpop.f32.mrf.mxu0
    %v1020 = vadd.f32 0.0, %v1019
    %v1021 = vpop.f32.mrf.mxu0
    %1022 = vmatprep.mubr.bf16.mxu0 0
    %1023 = vmatmul.mubr.bf16.gmra.mxu0 %v923
    %v1024 = vpop.f32.mrf.mxu0
    %v1025 = vadd.f32 0.0, %v1024
    %v1026 = vpop.f32.mrf.mxu0
    %v1027 = vpop.f32.mrf.mxu0
    %v1028 = vadd.f32 0.0, %v1027
    %v1029 = vpop.f32.mrf.mxu0
    %1030 = vmatprep.mubr.bf16.mxu0 0
    %1031 = vmatmul.mubr.bf16.gmra.mxu0 %v926
    %v1032 = vpop.f32.mrf.mxu0
    %v1033 = vadd.f32 0.0, %v1032
    %v1034 = vpop.f32.mrf.mxu0
    %v1035 = vpop.f32.mrf.mxu0
    %v1036 = vadd.f32 0.0, %v1035
    %v1037 = vpop.f32.mrf.mxu0
    %1038 = vmatprep.mubr.bf16.mxu0 0
    %1039 = vmatmul.mubr.bf16.gmra.mxu0 %v929
    %v1040 = vpop.f32.mrf.mxu0
    %v1041 = vadd.f32 0.0, %v1040
    %v1042 = vpop.f32.mrf.mxu0
    %v1043 = vpop.f32.mrf.mxu0
    %v1044 = vadd.f32 0.0, %v1043
    %v1045 = vpop.f32.mrf.mxu0
    %1046 = vmatprep.mubr.bf16.mxu0 0
    %1047 = vmatmul.mubr.bf16.gmra.mxu0 %v932
    %v1048 = vpop.f32.mrf.mxu0
    %v1049 = vadd.f32 0.0, %v1048
    %v1050 = vpop.f32.mrf.mxu0
    %v1051 = vpop.f32.mrf.mxu0
    %v1052 = vadd.f32 0.0, %v1051
    %v1053 = vpop.f32.mrf.mxu0
    %1054 = vmatprep.mubr.bf16.mxu0 0
    %1055 = vmatmul.mubr.bf16.gmra.mxu0 %v935
    %v1056 = vpop.f32.mrf.mxu0
    %v1057 = vadd.f32 0.0, %v1056
    %v1058 = vpop.f32.mrf.mxu0
    %v1059 = vpop.f32.mrf.mxu0
    %v1060 = vadd.f32 0.0, %v1059
    %v1061 = vpop.f32.mrf.mxu0
    %1062 = vmatprep.mubr.bf16.mxu0 0
    %1063 = vmatmul.mubr.bf16.gmra.mxu0 %v938
    %v1064 = vpop.f32.mrf.mxu0
    %v1065 = vadd.f32 0.0, %v1064
    %v1066 = vpop.f32.mrf.mxu0
    %v1067 = vpop.f32.mrf.mxu0
    %v1068 = vadd.f32 0.0, %v1067
    %v1069 = vpop.f32.mrf.mxu0
    %1070 = vmatprep.mubr.bf16.mxu0 0
    %1071 = vmatmul.mubr.bf16.gmra.mxu0 %v941
    %v1072 = vpop.f32.mrf.mxu0
    %v1073 = vadd.f32 0.0, %v1072
    %v1074 = vpop.f32.mrf.mxu0
    %v1075 = vpop.f32.mrf.mxu0
    %v1076 = vadd.f32 0.0, %v1075
    %v1077 = vpop.f32.mrf.mxu0
    %1078 = vmatprep.mubr.bf16.mxu0 0
    %1079 = vmatmul.mubr.bf16.gmra.mxu0 %v944
    %v1080 = vpop.f32.mrf.mxu0
    %v1081 = vadd.f32 0.0, %v1080
    %v1082 = vpop.f32.mrf.mxu0
    %v1083 = vpop.f32.mrf.mxu0
    %v1084 = vadd.f32 0.0, %v1083
    %v1085 = vpop.f32.mrf.mxu0
    %1086 = vmatprep.mubr.bf16.mxu0 0
    %1087 = vmatmul.mubr.bf16.gmra.mxu0 %v947
    %v1088 = vpop.f32.mrf.mxu0
    %v1089 = vadd.f32 0.0, %v1088
    %v1090 = vpop.f32.mrf.mxu0
    %v1091 = vpop.f32.mrf.mxu0
    %v1092 = vadd.f32 0.0, %v1091
    %v1093 = vpop.f32.mrf.mxu0
    %1094 = vmatprep.mubr.bf16.mxu0 0
    %1095 = vmatmul.mubr.bf16.gmra.mxu0 %v950
    %v1096 = vpop.f32.mrf.mxu0
    %v1097 = vadd.f32 0.0, %v1096
    %v1098 = vpop.f32.mrf.mxu0
    %v1099 = vpop.f32.mrf.mxu0
    %v1100 = vadd.f32 0.0, %v1099
    %v1101 = vpop.f32.mrf.mxu0
    %1102 = vmatprep.mubr.bf16.mxu0 0
    %1103 = vmatmul.mubr.bf16.gmra.mxu0 %v953
    %v1104 = vpop.f32.mrf.mxu0
    %v1105 = vadd.f32 0.0, %v1104
    %v1106 = vpop.f32.mrf.mxu0
    %v1107 = vpop.f32.mrf.mxu0
    %v1108 = vadd.f32 0.0, %v1107
    %v1109 = vpop.f32.mrf.mxu0
    %1110 = vmatprep.mubr.bf16.mxu0 0
    %1111 = vmatmul.mubr.bf16.gmra.mxu0 %v956
    %v1112 = vpop.f32.mrf.mxu0
    %v1113 = vadd.f32 0.0, %v1112
    %v1114 = vpop.f32.mrf.mxu0
    %v1115 = vpop.f32.mrf.mxu0
    %v1116 = vadd.f32 0.0, %v1115
    %v1117 = vpop.f32.mrf.mxu0
    %1118 = vdwg.mxu0
    %v1119 = vmul.f32 %v821, %v993
    %v1120 = vmul.f32 %v822, %v996
    %v1121 = vmul.f32 %v823, %v1001
    %v1122 = vmul.f32 %v824, %v1004
    %v1123 = vmul.f32 %v825, %v1009
    %v1124 = vmul.f32 %v826, %v1012
    %v1125 = vmul.f32 %v827, %v1017
    %v1126 = vmul.f32 %v828, %v1020
    %v1127 = vmul.f32 %v829, %v1025
    %v1128 = vmul.f32 %v830, %v1028
    %v1129 = vmul.f32 %v831, %v1033
    %v1130 = vmul.f32 %v832, %v1036
    %v1131 = vmul.f32 %v833, %v1041
    %v1132 = vmul.f32 %v834, %v1044
    %v1133 = vmul.f32 %v835, %v1049
    %v1134 = vmul.f32 %v836, %v1052
    %v1135 = vmul.f32 %v837, %v1057
    %v1136 = vmul.f32 %v838, %v1060
    %v1137 = vmul.f32 %v839, %v1065
    %v1138 = vmul.f32 %v840, %v1068
    %v1139 = vmul.f32 %v841, %v1073
    %v1140 = vmul.f32 %v842, %v1076
    %v1141 = vmul.f32 %v843, %v1081
    %v1142 = vmul.f32 %v844, %v1084
    %v1143 = vmul.f32 %v845, %v1089
    %v1144 = vmul.f32 %v846, %v1092
    %v1145 = vmul.f32 %v847, %v1097
    %v1146 = vmul.f32 %v848, %v1100
    %v1147 = vmul.f32 %v849, %v1105
    %v1148 = vmul.f32 %v850, %v1108
    %v1149 = vmul.f32 %v851, %v1113
    %v1150 = vmul.f32 %v852, %v1116
    %v1151 = vld [vmem:[#allocation5] sm:$0xf]
    %v1152 = vld [vmem:[#allocation5 + $0x4] sm:$0xf]
    %v1153 = vld [vmem:[#allocation5 + $0x8] sm:$0xf]
    %v1154 = vld [vmem:[#allocation5 + $0xc] sm:$0xf]
    %v1155 = vld [vmem:[#allocation5 + $0x10] sm:$0xf]
    %v1156 = vld [vmem:[#allocation5 + $0x14] sm:$0xf]
    %v1157 = vld [vmem:[#allocation5 + $0x18] sm:$0xf]
    %v1158 = vld [vmem:[#allocation5 + $0x1c] sm:$0xf]
    %v1159 = vld [vmem:[#allocation5 + $0x20] sm:$0xf]
    %v1160 = vld [vmem:[#allocation5 + $0x24] sm:$0xf]
    %v1161 = vld [vmem:[#allocation5 + $0x28] sm:$0xf]
    %v1162 = vld [vmem:[#allocation5 + $0x2c] sm:$0xf]
    %v1163 = vld [vmem:[#allocation5 + $0x30] sm:$0xf]
    %v1164 = vld [vmem:[#allocation5 + $0x34] sm:$0xf]
    %v1165 = vld [vmem:[#allocation5 + $0x38] sm:$0xf]
    %v1166 = vld [vmem:[#allocation5 + $0x3c] sm:$0xf]
    %v1167 = vpack.c.bf16 %v1120, %v1119
    %v1168 = vpack.c.bf16 %v1122, %v1121
    %v1169 = vpack.c.bf16 %v1124, %v1123
    %v1170 = vpack.c.bf16 %v1126, %v1125
    %v1171 = vpack.c.bf16 %v1128, %v1127
    %v1172 = vpack.c.bf16 %v1130, %v1129
    %v1173 = vpack.c.bf16 %v1132, %v1131
    %v1174 = vpack.c.bf16 %v1134, %v1133
    %v1175 = vpack.c.bf16 %v1136, %v1135
    %v1176 = vpack.c.bf16 %v1138, %v1137
    %v1177 = vpack.c.bf16 %v1140, %v1139
    %v1178 = vpack.c.bf16 %v1142, %v1141
    %v1179 = vpack.c.bf16 %v1144, %v1143
    %v1180 = vpack.c.bf16 %v1146, %v1145
    %v1181 = vpack.c.bf16 %v1148, %v1147
    %v1182 = vpack.c.bf16 %v1150, %v1149
    %v1199 = vunpack.c.l.b16 %v1151
    %v1200 = vunpack.c.l.b16 %v1152
    %v1201 = vunpack.c.l.b16 %v1153
    %v1202 = vunpack.c.l.b16 %v1154
    %v1203 = vunpack.c.l.b16 %v1155
    %v1204 = vunpack.c.l.b16 %v1156
    %v1205 = vunpack.c.l.b16 %v1157
    %v1206 = vunpack.c.l.b16 %v1158
    %v1207 = vunpack.c.l.b16 %v1159
    %v1208 = vunpack.c.l.b16 %v1160
    %v1209 = vunpack.c.l.b16 %v1161
    %v1210 = vunpack.c.l.b16 %v1162
    %v1211 = vunpack.c.l.b16 %v1163
    %v1212 = vunpack.c.l.b16 %v1164
    %v1213 = vunpack.c.l.b16 %v1165
    %v1214 = vunpack.c.l.b16 %v1166
    %v1215 = vpack.c.b16 %v1200, %v1199
    %v1216 = vpack.c.b16 %v1202, %v1201
    %v1217 = vpack.c.b16 %v1204, %v1203
    %v1218 = vpack.c.b16 %v1206, %v1205
    %v1219 = vpack.c.b16 %v1208, %v1207
    %v1220 = vpack.c.b16 %v1210, %v1209
    %v1221 = vpack.c.b16 %v1212, %v1211
    %v1222 = vpack.c.b16 %v1214, %v1213
    %1231 = vmatprep.subr.bf16.mxu0 0
    %1232 = vmatpush1.bf16.msra.mxu0 %v1222
    %1233 = vmatprep.subr.bf16.mxu0 0
    %1234 = vmatpush1.bf16.msra.mxu0 %v1221
    %1235 = vmatprep.subr.bf16.mxu0 0
    %1236 = vmatpush1.bf16.msra.mxu0 %v1220
    %1237 = vmatprep.subr.bf16.mxu0 0
    %1238 = vmatpush1.bf16.msra.mxu0 %v1219
    %1239 = vmatprep.subr.bf16.mxu0 0
    %1240 = vmatpush1.bf16.msra.mxu0 %v1218
    %1241 = vmatprep.subr.bf16.mxu0 0
    %1242 = vmatpush1.bf16.msra.mxu0 %v1217
    %1243 = vmatprep.subr.bf16.mxu0 0
    %1244 = vmatpush1.bf16.msra.mxu0 %v1216
    %1245 = vmatprep.subr.bf16.mxu0 0
    %1246 = vmatpush1.bf16.msra.mxu0 %v1215
    %1247 = vmatprep.subr.bf16.mxu0 0
    %1248 = vmatpush2.bf16.msra.mxu0 0
    %1249 = vmatprep.subr.bf16.mxu0 0
    %1250 = vmatpush2.bf16.msra.mxu0 0
    %1251 = vmatprep.subr.bf16.mxu0 0
    %1252 = vmatpush2.bf16.msra.mxu0 0
    %1253 = vmatprep.subr.bf16.mxu0 0
    %1254 = vmatpush2.bf16.msra.mxu0 0
    %1255 = vmatprep.subr.bf16.mxu0 0
    %1256 = vmatpush2.bf16.msra.mxu0 0
    %1257 = vmatprep.subr.bf16.mxu0 0
    %1258 = vmatpush2.bf16.msra.mxu0 0
    %1259 = vmatprep.subr.bf16.mxu0 0
    %1260 = vmatpush2.bf16.msra.mxu0 0
    %1261 = vmatprep.subr.bf16.mxu0 0
    %1262 = vmatpush2.bf16.msra.mxu0 0
    %1263 = vmatprep.mubr.bf16.mxu0 0
    %1264 = vmatmul.mubr.bf16.gmra.mxu0 %v1167
    %v1265 = vpop.f32.mrf.mxu0
    %v1266 = vadd.f32 0.0, %v1265
    %v1267 = vpop.f32.mrf.mxu0
    %v1268 = vpop.f32.mrf.mxu0
    %v1269 = vadd.f32 0.0, %v1268
    %v1270 = vpop.f32.mrf.mxu0
    %1271 = vmatprep.mubr.bf16.mxu0 0
    %1272 = vmatmul.mubr.bf16.gmra.mxu0 %v1168
    %v1273 = vpop.f32.mrf.mxu0
    %v1274 = vadd.f32 0.0, %v1273
    %v1275 = vpop.f32.mrf.mxu0
    %v1276 = vpop.f32.mrf.mxu0
    %v1277 = vadd.f32 0.0, %v1276
    %v1278 = vpop.f32.mrf.mxu0
    %1279 = vmatprep.mubr.bf16.mxu0 0
    %1280 = vmatmul.mubr.bf16.gmra.mxu0 %v1169
    %v1281 = vpop.f32.mrf.mxu0
    %v1282 = vadd.f32 0.0, %v1281
    %v1283 = vpop.f32.mrf.mxu0
    %v1284 = vpop.f32.mrf.mxu0
    %v1285 = vadd.f32 0.0, %v1284
    %v1286 = vpop.f32.mrf.mxu0
    %1287 = vmatprep.mubr.bf16.mxu0 0
    %1288 = vmatmul.mubr.bf16.gmra.mxu0 %v1170
    %v1289 = vpop.f32.mrf.mxu0
    %v1290 = vadd.f32 0.0, %v1289
    %v1291 = vpop.f32.mrf.mxu0
    %v1292 = vpop.f32.mrf.mxu0
    %v1293 = vadd.f32 0.0, %v1292
    %v1294 = vpop.f32.mrf.mxu0
    %1295 = vmatprep.mubr.bf16.mxu0 0
    %1296 = vmatmul.mubr.bf16.gmra.mxu0 %v1171
    %v1297 = vpop.f32.mrf.mxu0
    %v1298 = vadd.f32 0.0, %v1297
    %v1299 = vpop.f32.mrf.mxu0
    %v1300 = vpop.f32.mrf.mxu0
    %v1301 = vadd.f32 0.0, %v1300
    %v1302 = vpop.f32.mrf.mxu0
    %1303 = vmatprep.mubr.bf16.mxu0 0
    %1304 = vmatmul.mubr.bf16.gmra.mxu0 %v1172
    %v1305 = vpop.f32.mrf.mxu0
    %v1306 = vadd.f32 0.0, %v1305
    %v1307 = vpop.f32.mrf.mxu0
    %v1308 = vpop.f32.mrf.mxu0
    %v1309 = vadd.f32 0.0, %v1308
    %v1310 = vpop.f32.mrf.mxu0
    %1311 = vmatprep.mubr.bf16.mxu0 0
    %1312 = vmatmul.mubr.bf16.gmra.mxu0 %v1173
    %v1313 = vpop.f32.mrf.mxu0
    %v1314 = vadd.f32 0.0, %v1313
    %v1315 = vpop.f32.mrf.mxu0
    %v1316 = vpop.f32.mrf.mxu0
    %v1317 = vadd.f32 0.0, %v1316
    %v1318 = vpop.f32.mrf.mxu0
    %1319 = vmatprep.mubr.bf16.mxu0 0
    %1320 = vmatmul.mubr.bf16.gmra.mxu0 %v1174
    %v1321 = vpop.f32.mrf.mxu0
    %v1322 = vadd.f32 0.0, %v1321
    %v1323 = vpop.f32.mrf.mxu0
    %v1324 = vpop.f32.mrf.mxu0
    %v1325 = vadd.f32 0.0, %v1324
    %v1326 = vpop.f32.mrf.mxu0
    %1327 = vmatprep.mubr.bf16.mxu0 0
    %1328 = vmatmul.mubr.bf16.gmra.mxu0 %v1175
    %v1329 = vpop.f32.mrf.mxu0
    %v1330 = vadd.f32 0.0, %v1329
    %v1331 = vpop.f32.mrf.mxu0
    %v1332 = vpop.f32.mrf.mxu0
    %v1333 = vadd.f32 0.0, %v1332
    %v1334 = vpop.f32.mrf.mxu0
    %1335 = vmatprep.mubr.bf16.mxu0 0
    %1336 = vmatmul.mubr.bf16.gmra.mxu0 %v1176
    %v1337 = vpop.f32.mrf.mxu0
    %v1338 = vadd.f32 0.0, %v1337
    %v1339 = vpop.f32.mrf.mxu0
    %v1340 = vpop.f32.mrf.mxu0
    %v1341 = vadd.f32 0.0, %v1340
    %v1342 = vpop.f32.mrf.mxu0
    %1343 = vmatprep.mubr.bf16.mxu0 0
    %1344 = vmatmul.mubr.bf16.gmra.mxu0 %v1177
    %v1345 = vpop.f32.mrf.mxu0
    %v1346 = vadd.f32 0.0, %v1345
    %v1347 = vpop.f32.mrf.mxu0
    %v1348 = vpop.f32.mrf.mxu0
    %v1349 = vadd.f32 0.0, %v1348
    %v1350 = vpop.f32.mrf.mxu0
    %1351 = vmatprep.mubr.bf16.mxu0 0
    %1352 = vmatmul.mubr.bf16.gmra.mxu0 %v1178
    %v1353 = vpop.f32.mrf.mxu0
    %v1354 = vadd.f32 0.0, %v1353
    %v1355 = vpop.f32.mrf.mxu0
    %v1356 = vpop.f32.mrf.mxu0
    %v1357 = vadd.f32 0.0, %v1356
    %v1358 = vpop.f32.mrf.mxu0
    %1359 = vmatprep.mubr.bf16.mxu0 0
    %1360 = vmatmul.mubr.bf16.gmra.mxu0 %v1179
    %v1361 = vpop.f32.mrf.mxu0
    %v1362 = vadd.f32 0.0, %v1361
    %v1363 = vpop.f32.mrf.mxu0
    %v1364 = vpop.f32.mrf.mxu0
    %v1365 = vadd.f32 0.0, %v1364
    %v1366 = vpop.f32.mrf.mxu0
    %1367 = vmatprep.mubr.bf16.mxu0 0
    %1368 = vmatmul.mubr.bf16.gmra.mxu0 %v1180
    %v1369 = vpop.f32.mrf.mxu0
    %v1370 = vadd.f32 0.0, %v1369
    %v1371 = vpop.f32.mrf.mxu0
    %v1372 = vpop.f32.mrf.mxu0
    %v1373 = vadd.f32 0.0, %v1372
    %v1374 = vpop.f32.mrf.mxu0
    %1375 = vmatprep.mubr.bf16.mxu0 0
    %1376 = vmatmul.mubr.bf16.gmra.mxu0 %v1181
    %v1377 = vpop.f32.mrf.mxu0
    %v1378 = vadd.f32 0.0, %v1377
    %v1379 = vpop.f32.mrf.mxu0
    %v1380 = vpop.f32.mrf.mxu0
    %v1381 = vadd.f32 0.0, %v1380
    %v1382 = vpop.f32.mrf.mxu0
    %1383 = vmatprep.mubr.bf16.mxu0 0
    %1384 = vmatmul.mubr.bf16.gmra.mxu0 %v1182
    %v1385 = vpop.f32.mrf.mxu0
    %v1386 = vadd.f32 0.0, %v1385
    %v1387 = vpop.f32.mrf.mxu0
    %v1388 = vpop.f32.mrf.mxu0
    %v1389 = vadd.f32 0.0, %v1388
    %v1390 = vpop.f32.mrf.mxu0
    %1391 = vdwg.mxu0
    %v1392 = vsub.f32 0.0, %v1266
    %v1393 = vsub.f32 0.0, %v1269
    %v1394 = vsub.f32 0.0, %v1274
    %v1395 = vsub.f32 0.0, %v1277
    %v1396 = vsub.f32 0.0, %v1282
    %v1397 = vsub.f32 0.0, %v1285
    %v1398 = vsub.f32 0.0, %v1290
    %v1399 = vsub.f32 0.0, %v1293
    %v1400 = vsub.f32 0.0, %v1298
    %v1401 = vsub.f32 0.0, %v1301
    %v1402 = vsub.f32 0.0, %v1306
    %v1403 = vsub.f32 0.0, %v1309
    %v1404 = vsub.f32 0.0, %v1314
    %v1405 = vsub.f32 0.0, %v1317
    %v1406 = vsub.f32 0.0, %v1322
    %v1407 = vsub.f32 0.0, %v1325
    %v1408 = vsub.f32 0.0, %v1330
    %v1409 = vsub.f32 0.0, %v1333
    %v1410 = vsub.f32 0.0, %v1338
    %v1411 = vsub.f32 0.0, %v1341
    %v1412 = vsub.f32 0.0, %v1346
    %v1413 = vsub.f32 0.0, %v1349
    %v1414 = vsub.f32 0.0, %v1354
    %v1415 = vsub.f32 0.0, %v1357
    %v1416 = vsub.f32 0.0, %v1362
    %v1417 = vsub.f32 0.0, %v1365
    %v1418 = vsub.f32 0.0, %v1370
    %v1419 = vsub.f32 0.0, %v1373
    %v1420 = vsub.f32 0.0, %v1378
    %v1421 = vsub.f32 0.0, %v1381
    %v1422 = vsub.f32 0.0, %v1386
    %v1423 = vsub.f32 0.0, %v1389
    %v1424 = vmin.f32 %v1392, 60.0
    %v1425 = vmin.f32 %v1393, 60.0
    %v1426 = vmin.f32 %v1394, 60.0
    %v1427 = vmin.f32 %v1395, 60.0
    %v1428 = vmin.f32 %v1396, 60.0
    %v1429 = vmin.f32 %v1397, 60.0
    %v1430 = vmin.f32 %v1398, 60.0
    %v1431 = vmin.f32 %v1399, 60.0
    %v1432 = vmin.f32 %v1400, 60.0
    %v1433 = vmin.f32 %v1401, 60.0
    %v1434 = vmin.f32 %v1402, 60.0
    %v1435 = vmin.f32 %v1403, 60.0
    %v1436 = vmin.f32 %v1404, 60.0
    %v1437 = vmin.f32 %v1405, 60.0
    %v1438 = vmin.f32 %v1406, 60.0
    %v1439 = vmin.f32 %v1407, 60.0
    %v1440 = vmin.f32 %v1408, 60.0
    %v1441 = vmin.f32 %v1409, 60.0
    %v1442 = vmin.f32 %v1410, 60.0
    %v1443 = vmin.f32 %v1411, 60.0
    %v1444 = vmin.f32 %v1412, 60.0
    %v1445 = vmin.f32 %v1413, 60.0
    %v1446 = vmin.f32 %v1414, 60.0
    %v1447 = vmin.f32 %v1415, 60.0
    %v1448 = vmin.f32 %v1416, 60.0
    %v1449 = vmin.f32 %v1417, 60.0
    %v1450 = vmin.f32 %v1418, 60.0
    %v1451 = vmin.f32 %v1419, 60.0
    %v1452 = vmin.f32 %v1420, 60.0
    %v1453 = vmin.f32 %v1421, 60.0
    %v1454 = vmin.f32 %v1422, 60.0
    %v1455 = vmin.f32 %v1423, 60.0
    %v1456 = vmul.f32 %v1424, 1.442695
    %v1457 = vpow.pop %v1456
    %v1458 = vmul.f32 %v1425, 1.442695
    %v1459 = vpow.pop %v1458
    %v1460 = vmul.f32 %v1426, 1.442695
    %v1461 = vpow.pop %v1460
    %v1462 = vmul.f32 %v1427, 1.442695
    %v1463 = vpow.pop %v1462
    %v1464 = vmul.f32 %v1428, 1.442695
    %v1465 = vpow.pop %v1464
    %v1466 = vmul.f32 %v1429, 1.442695
    %v1467 = vpow.pop %v1466
    %v1468 = vmul.f32 %v1430, 1.442695
    %v1469 = vpow.pop %v1468
    %v1470 = vmul.f32 %v1431, 1.442695
    %v1471 = vpow.pop %v1470
    %v1472 = vmul.f32 %v1432, 1.442695
    %v1473 = vpow.pop %v1472
    %v1474 = vmul.f32 %v1433, 1.442695
    %v1475 = vpow.pop %v1474
    %v1476 = vmul.f32 %v1434, 1.442695
    %v1477 = vpow.pop %v1476
    %v1478 = vmul.f32 %v1435, 1.442695
    %v1479 = vpow.pop %v1478
    %v1480 = vmul.f32 %v1436, 1.442695
    %v1481 = vpow.pop %v1480
    %v1482 = vmul.f32 %v1437, 1.442695
    %v1483 = vpow.pop %v1482
    %v1484 = vmul.f32 %v1438, 1.442695
    %v1485 = vpow.pop %v1484
    %v1486 = vmul.f32 %v1439, 1.442695
    %v1487 = vpow.pop %v1486
    %v1488 = vmul.f32 %v1440, 1.442695
    %v1489 = vpow.pop %v1488
    %v1490 = vmul.f32 %v1441, 1.442695
    %v1491 = vpow.pop %v1490
    %v1492 = vmul.f32 %v1442, 1.442695
    %v1493 = vpow.pop %v1492
    %v1494 = vmul.f32 %v1443, 1.442695
    %v1495 = vpow.pop %v1494
    %v1496 = vmul.f32 %v1444, 1.442695
    %v1497 = vpow.pop %v1496
    %v1498 = vmul.f32 %v1445, 1.442695
    %v1499 = vpow.pop %v1498
    %v1500 = vmul.f32 %v1446, 1.442695
    %v1501 = vpow.pop %v1500
    %v1502 = vmul.f32 %v1447, 1.442695
    %v1503 = vpow.pop %v1502
    %v1504 = vmul.f32 %v1448, 1.442695
    %v1505 = vpow.pop %v1504
    %v1506 = vmul.f32 %v1449, 1.442695
    %v1507 = vpow.pop %v1506
    %v1508 = vmul.f32 %v1450, 1.442695
    %v1509 = vpow.pop %v1508
    %v1510 = vmul.f32 %v1451, 1.442695
    %v1511 = vpow.pop %v1510
    %v1512 = vmul.f32 %v1452, 1.442695
    %v1513 = vpow.pop %v1512
    %v1514 = vmul.f32 %v1453, 1.442695
    %v1515 = vpow.pop %v1514
    %v1516 = vmul.f32 %v1454, 1.442695
    %v1517 = vpow.pop %v1516
    %v1518 = vmul.f32 %v1455, 1.442695
    %v1519 = vpow.pop %v1518
    %v1520 = vadd.f32 %v1457, 1.0
    %v1521 = vadd.f32 %v1459, 1.0
    %v1522 = vadd.f32 %v1461, 1.0
    %v1523 = vadd.f32 %v1463, 1.0
    %v1524 = vadd.f32 %v1465, 1.0
    %v1525 = vadd.f32 %v1467, 1.0
    %v1526 = vadd.f32 %v1469, 1.0
    %v1527 = vadd.f32 %v1471, 1.0
    %v1528 = vadd.f32 %v1473, 1.0
    %v1529 = vadd.f32 %v1475, 1.0
    %v1530 = vadd.f32 %v1477, 1.0
    %v1531 = vadd.f32 %v1479, 1.0
    %v1532 = vadd.f32 %v1481, 1.0
    %v1533 = vadd.f32 %v1483, 1.0
    %v1534 = vadd.f32 %v1485, 1.0
    %v1535 = vadd.f32 %v1487, 1.0
    %v1536 = vadd.f32 %v1489, 1.0
    %v1537 = vadd.f32 %v1491, 1.0
    %v1538 = vadd.f32 %v1493, 1.0
    %v1539 = vadd.f32 %v1495, 1.0
    %v1540 = vadd.f32 %v1497, 1.0
    %v1541 = vadd.f32 %v1499, 1.0
    %v1542 = vadd.f32 %v1501, 1.0
    %v1543 = vadd.f32 %v1503, 1.0
    %v1544 = vadd.f32 %v1505, 1.0
    %v1545 = vadd.f32 %v1507, 1.0
    %v1546 = vadd.f32 %v1509, 1.0
    %v1547 = vadd.f32 %v1511, 1.0
    %v1548 = vadd.f32 %v1513, 1.0
    %v1549 = vadd.f32 %v1515, 1.0
    %v1550 = vadd.f32 %v1517, 1.0
    %v1551 = vadd.f32 %v1519, 1.0
    %v1552 = vrcp.pop %v1520
    %v1553 = vrcp.pop %v1521
    %v1554 = vrcp.pop %v1522
    %v1555 = vrcp.pop %v1523
    %v1556 = vrcp.pop %v1524
    %v1557 = vrcp.pop %v1525
    %v1558 = vrcp.pop %v1526
    %v1559 = vrcp.pop %v1527
    %v1560 = vrcp.pop %v1528
    %v1561 = vrcp.pop %v1529
    %v1562 = vrcp.pop %v1530
    %v1563 = vrcp.pop %v1531
    %v1564 = vrcp.pop %v1532
    %v1565 = vrcp.pop %v1533
    %v1566 = vrcp.pop %v1534
    %v1567 = vrcp.pop %v1535
    %v1568 = vrcp.pop %v1536
    %v1569 = vrcp.pop %v1537
    %v1570 = vrcp.pop %v1538
    %v1571 = vrcp.pop %v1539
    %v1572 = vrcp.pop %v1540
    %v1573 = vrcp.pop %v1541
    %v1574 = vrcp.pop %v1542
    %v1575 = vrcp.pop %v1543
    %v1576 = vrcp.pop %v1544
    %v1577 = vrcp.pop %v1545
    %v1578 = vrcp.pop %v1546
    %v1579 = vrcp.pop %v1547
    %v1580 = vrcp.pop %v1548
    %v1581 = vrcp.pop %v1549
    %v1582 = vrcp.pop %v1550
    %v1583 = vrcp.pop %v1551
    %v1584 = vmul.f32 %v1266, %v1552
    %v1585 = vmul.f32 %v1269, %v1553
    %v1586 = vmul.f32 %v1274, %v1554
    %v1587 = vmul.f32 %v1277, %v1555
    %v1588 = vmul.f32 %v1282, %v1556
    %v1589 = vmul.f32 %v1285, %v1557
    %v1590 = vmul.f32 %v1290, %v1558
    %v1591 = vmul.f32 %v1293, %v1559
    %v1592 = vmul.f32 %v1298, %v1560
    %v1593 = vmul.f32 %v1301, %v1561
    %v1594 = vmul.f32 %v1306, %v1562
    %v1595 = vmul.f32 %v1309, %v1563
    %v1596 = vmul.f32 %v1314, %v1564
    %v1597 = vmul.f32 %v1317, %v1565
    %v1598 = vmul.f32 %v1322, %v1566
    %v1599 = vmul.f32 %v1325, %v1567
    %v1600 = vmul.f32 %v1330, %v1568
    %v1601 = vmul.f32 %v1333, %v1569
    %v1602 = vmul.f32 %v1338, %v1570
    %v1603 = vmul.f32 %v1341, %v1571
    %v1604 = vmul.f32 %v1346, %v1572
    %v1605 = vmul.f32 %v1349, %v1573
    %v1606 = vmul.f32 %v1354, %v1574
    %v1607 = vmul.f32 %v1357, %v1575
    %v1608 = vmul.f32 %v1362, %v1576
    %v1609 = vmul.f32 %v1365, %v1577
    %v1610 = vmul.f32 %v1370, %v1578
    %v1611 = vmul.f32 %v1373, %v1579
    %v1612 = vmul.f32 %v1378, %v1580
    %v1613 = vmul.f32 %v1381, %v1581
    %v1614 = vmul.f32 %v1386, %v1582
    %v1615 = vmul.f32 %v1389, %v1583
    %v1616 = vpack.c.bf16 %v598, %v597
    %v1617 = vpack.c.bf16 %v600, %v599
    %v1618 = vpack.c.bf16 %v602, %v601
    %v1619 = vpack.c.bf16 %v604, %v603
    %v1620 = vpack.c.bf16 %v606, %v605
    %v1621 = vpack.c.bf16 %v608, %v607
    %v1622 = vpack.c.bf16 %v610, %v609
    %v1623 = vpack.c.bf16 %v612, %v611
    %v1624 = vpack.c.bf16 %v614, %v613
    %v1625 = vpack.c.bf16 %v616, %v615
    %v1626 = vpack.c.bf16 %v618, %v617
    %v1627 = vpack.c.bf16 %v620, %v619
    %v1628 = vpack.c.bf16 %v622, %v621
    %v1629 = vpack.c.bf16 %v624, %v623
    %v1630 = vpack.c.bf16 %v626, %v625
    %v1631 = vpack.c.bf16 %v628, %v627
    %v1648 = vunpack.c.l.b16 %v1616
    %v1649 = vunpack.c.h.b16 %v1616
    %v1650 = vunpack.c.l.b16 %v1617
    %v1651 = vunpack.c.h.b16 %v1617
    %v1652 = vunpack.c.l.b16 %v1618
    %v1653 = vunpack.c.h.b16 %v1618
    %v1654 = vunpack.c.l.b16 %v1619
    %v1655 = vunpack.c.h.b16 %v1619
    %v1656 = vunpack.c.l.b16 %v1620
    %v1657 = vunpack.c.h.b16 %v1620
    %v1658 = vunpack.c.l.b16 %v1621
    %v1659 = vunpack.c.h.b16 %v1621
    %v1660 = vunpack.c.l.b16 %v1622
    %v1661 = vunpack.c.h.b16 %v1622
    %v1662 = vunpack.c.l.b16 %v1623
    %v1663 = vunpack.c.h.b16 %v1623
    %v1664 = vunpack.c.l.b16 %v1624
    %v1665 = vunpack.c.h.b16 %v1624
    %v1666 = vunpack.c.l.b16 %v1625
    %v1667 = vunpack.c.h.b16 %v1625
    %v1668 = vunpack.c.l.b16 %v1626
    %v1669 = vunpack.c.h.b16 %v1626
    %v1670 = vunpack.c.l.b16 %v1627
    %v1671 = vunpack.c.h.b16 %v1627
    %v1672 = vunpack.c.l.b16 %v1628
    %v1673 = vunpack.c.h.b16 %v1628
    %v1674 = vunpack.c.l.b16 %v1629
    %v1675 = vunpack.c.h.b16 %v1629
    %v1676 = vunpack.c.l.b16 %v1630
    %v1677 = vunpack.c.h.b16 %v1630
    %v1678 = vunpack.c.l.b16 %v1631
    %v1679 = vunpack.c.h.b16 %v1631
    %v1680 = vpack.c.b16 %v1648, %v1648
    %v1681 = vpack.c.b16 %v1649, %v1649
    %v1682 = vpack.c.b16 %v1650, %v1650
    %v1683 = vpack.c.b16 %v1651, %v1651
    %v1684 = vpack.c.b16 %v1652, %v1652
    %v1685 = vpack.c.b16 %v1653, %v1653
    %v1686 = vpack.c.b16 %v1654, %v1654
    %v1687 = vpack.c.b16 %v1655, %v1655
    %v1688 = vpack.c.b16 %v1656, %v1656
    %v1689 = vpack.c.b16 %v1657, %v1657
    %v1690 = vpack.c.b16 %v1658, %v1658
    %v1691 = vpack.c.b16 %v1659, %v1659
    %v1692 = vpack.c.b16 %v1660, %v1660
    %v1693 = vpack.c.b16 %v1661, %v1661
    %v1694 = vpack.c.b16 %v1662, %v1662
    %v1695 = vpack.c.b16 %v1663, %v1663
    %v1696 = vpack.c.b16 %v1664, %v1664
    %v1697 = vpack.c.b16 %v1665, %v1665
    %v1698 = vpack.c.b16 %v1666, %v1666
    %v1699 = vpack.c.b16 %v1667, %v1667
    %v1700 = vpack.c.b16 %v1668, %v1668
    %v1701 = vpack.c.b16 %v1669, %v1669
    %v1702 = vpack.c.b16 %v1670, %v1670
    %v1703 = vpack.c.b16 %v1671, %v1671
    %v1704 = vpack.c.b16 %v1672, %v1672
    %v1705 = vpack.c.b16 %v1673, %v1673
    %v1706 = vpack.c.b16 %v1674, %v1674
    %v1707 = vpack.c.b16 %v1675, %v1675
    %v1708 = vpack.c.b16 %v1676, %v1676
    %v1709 = vpack.c.b16 %v1677, %v1677
    %v1710 = vpack.c.b16 %v1678, %v1678
    %v1711 = vpack.c.b16 %v1679, %v1679
    %1744 = vst [vmem:[#allocation7] sm:$0xf] %v1680
    %1745 = vst [vmem:[#allocation7 + $0x4] sm:$0xf] %v1681
    %1746 = vst [vmem:[#allocation7 + $0x8] sm:$0xf] %v1682
    %1747 = vst [vmem:[#allocation7 + $0xc] sm:$0xf] %v1683
    %1748 = vst [vmem:[#allocation7 + $0x10] sm:$0xf] %v1684
    %1749 = vst [vmem:[#allocation7 + $0x14] sm:$0xf] %v1685
    %1750 = vst [vmem:[#allocation7 + $0x18] sm:$0xf] %v1686
    %1751 = vst [vmem:[#allocation7 + $0x1c] sm:$0xf] %v1687
    %1752 = vst [vmem:[#allocation7 + $0x20] sm:$0xf] %v1688
    %1753 = vst [vmem:[#allocation7 + $0x24] sm:$0xf] %v1689
    %1754 = vst [vmem:[#allocation7 + $0x28] sm:$0xf] %v1690
    %1755 = vst [vmem:[#allocation7 + $0x2c] sm:$0xf] %v1691
    %1756 = vst [vmem:[#allocation7 + $0x30] sm:$0xf] %v1692
    %1757 = vst [vmem:[#allocation7 + $0x34] sm:$0xf] %v1693
    %1758 = vst [vmem:[#allocation7 + $0x38] sm:$0xf] %v1694
    %1759 = vst [vmem:[#allocation7 + $0x3c] sm:$0xf] %v1695
    %1760 = vst [vmem:[#allocation7 + $0x40] sm:$0xf] %v1696
    %1761 = vst [vmem:[#allocation7 + $0x44] sm:$0xf] %v1697
    %1762 = vst [vmem:[#allocation7 + $0x48] sm:$0xf] %v1698
    %1763 = vst [vmem:[#allocation7 + $0x4c] sm:$0xf] %v1699
    %1764 = vst [vmem:[#allocation7 + $0x50] sm:$0xf] %v1700
    %1765 = vst [vmem:[#allocation7 + $0x54] sm:$0xf] %v1701
    %1766 = vst [vmem:[#allocation7 + $0x58] sm:$0xf] %v1702
    %1767 = vst [vmem:[#allocation7 + $0x5c] sm:$0xf] %v1703
    %1768 = vst [vmem:[#allocation7 + $0x60] sm:$0xf] %v1704
    %1769 = vst [vmem:[#allocation7 + $0x64] sm:$0xf] %v1705
    %1770 = vst [vmem:[#allocation7 + $0x68] sm:$0xf] %v1706
    %1771 = vst [vmem:[#allocation7 + $0x6c] sm:$0xf] %v1707
    %1772 = vst [vmem:[#allocation7 + $0x70] sm:$0xf] %v1708
    %1773 = vst [vmem:[#allocation7 + $0x74] sm:$0xf] %v1709
    %1774 = vst [vmem:[#allocation7 + $0x78] sm:$0xf] %v1710
    %1775 = vst [vmem:[#allocation7 + $0x7c] sm:$0xf] %v1711
    %v1776 = vpack.c.bf16 %v1585, %v1584
    %v1777 = vpack.c.bf16 %v1587, %v1586
    %v1778 = vpack.c.bf16 %v1589, %v1588
    %v1779 = vpack.c.bf16 %v1591, %v1590
    %v1780 = vpack.c.bf16 %v1593, %v1592
    %v1781 = vpack.c.bf16 %v1595, %v1594
    %v1782 = vpack.c.bf16 %v1597, %v1596
    %v1783 = vpack.c.bf16 %v1599, %v1598
    %v1784 = vpack.c.bf16 %v1601, %v1600
    %v1785 = vpack.c.bf16 %v1603, %v1602
    %v1786 = vpack.c.bf16 %v1605, %v1604
    %v1787 = vpack.c.bf16 %v1607, %v1606
    %v1788 = vpack.c.bf16 %v1609, %v1608
    %v1789 = vpack.c.bf16 %v1611, %v1610
    %v1790 = vpack.c.bf16 %v1613, %v1612
    %v1791 = vpack.c.bf16 %v1615, %v1614
    %v1808 = vunpack.c.l.b16 %v1776
    %v1809 = vunpack.c.h.b16 %v1776
    %v1810 = vunpack.c.l.b16 %v1777
    %v1811 = vunpack.c.h.b16 %v1777
    %v1812 = vunpack.c.l.b16 %v1778
    %v1813 = vunpack.c.h.b16 %v1778
    %v1814 = vunpack.c.l.b16 %v1779
    %v1815 = vunpack.c.h.b16 %v1779
    %v1816 = vunpack.c.l.b16 %v1780
    %v1817 = vunpack.c.h.b16 %v1780
    %v1818 = vunpack.c.l.b16 %v1781
    %v1819 = vunpack.c.h.b16 %v1781
    %v1820 = vunpack.c.l.b16 %v1782
    %v1821 = vunpack.c.h.b16 %v1782
    %v1822 = vunpack.c.l.b16 %v1783
    %v1823 = vunpack.c.h.b16 %v1783
    %v1824 = vunpack.c.l.b16 %v1784
    %v1825 = vunpack.c.h.b16 %v1784
    %v1826 = vunpack.c.l.b16 %v1785
    %v1827 = vunpack.c.h.b16 %v1785
    %v1828 = vunpack.c.l.b16 %v1786
    %v1829 = vunpack.c.h.b16 %v1786
    %v1830 = vunpack.c.l.b16 %v1787
    %v1831 = vunpack.c.h.b16 %v1787
    %v1832 = vunpack.c.l.b16 %v1788
    %v1833 = vunpack.c.h.b16 %v1788
    %v1834 = vunpack.c.l.b16 %v1789
    %v1835 = vunpack.c.h.b16 %v1789
    %v1836 = vunpack.c.l.b16 %v1790
    %v1837 = vunpack.c.h.b16 %v1790
    %v1838 = vunpack.c.l.b16 %v1791
    %v1839 = vunpack.c.h.b16 %v1791
    %v1840 = vpack.c.b16 %v1808, %v1808
    %v1841 = vpack.c.b16 %v1809, %v1809
    %v1842 = vpack.c.b16 %v1810, %v1810
    %v1843 = vpack.c.b16 %v1811, %v1811
    %v1844 = vpack.c.b16 %v1812, %v1812
    %v1845 = vpack.c.b16 %v1813, %v1813
    %v1846 = vpack.c.b16 %v1814, %v1814
    %v1847 = vpack.c.b16 %v1815, %v1815
    %v1848 = vpack.c.b16 %v1816, %v1816
    %v1849 = vpack.c.b16 %v1817, %v1817
    %v1850 = vpack.c.b16 %v1818, %v1818
    %v1851 = vpack.c.b16 %v1819, %v1819
    %v1852 = vpack.c.b16 %v1820, %v1820
    %v1853 = vpack.c.b16 %v1821, %v1821
    %v1854 = vpack.c.b16 %v1822, %v1822
    %v1855 = vpack.c.b16 %v1823, %v1823
    %v1856 = vpack.c.b16 %v1824, %v1824
    %v1857 = vpack.c.b16 %v1825, %v1825
    %v1858 = vpack.c.b16 %v1826, %v1826
    %v1859 = vpack.c.b16 %v1827, %v1827
    %v1860 = vpack.c.b16 %v1828, %v1828
    %v1861 = vpack.c.b16 %v1829, %v1829
    %v1862 = vpack.c.b16 %v1830, %v1830
    %v1863 = vpack.c.b16 %v1831, %v1831
    %v1864 = vpack.c.b16 %v1832, %v1832
    %v1865 = vpack.c.b16 %v1833, %v1833
    %v1866 = vpack.c.b16 %v1834, %v1834
    %v1867 = vpack.c.b16 %v1835, %v1835
    %v1868 = vpack.c.b16 %v1836, %v1836
    %v1869 = vpack.c.b16 %v1837, %v1837
    %v1870 = vpack.c.b16 %v1838, %v1838
    %v1871 = vpack.c.b16 %v1839, %v1839
    %1904 = vst [vmem:[#allocation8] sm:$0xf] %v1840
    %1905 = vst [vmem:[#allocation8 + $0x4] sm:$0xf] %v1841
    %1906 = vst [vmem:[#allocation8 + $0x8] sm:$0xf] %v1842
    %1907 = vst [vmem:[#allocation8 + $0xc] sm:$0xf] %v1843
    %1908 = vst [vmem:[#allocation8 + $0x10] sm:$0xf] %v1844
    %1909 = vst [vmem:[#allocation8 + $0x14] sm:$0xf] %v1845
    %1910 = vst [vmem:[#allocation8 + $0x18] sm:$0xf] %v1846
    %1911 = vst [vmem:[#allocation8 + $0x1c] sm:$0xf] %v1847
    %1912 = vst [vmem:[#allocation8 + $0x20] sm:$0xf] %v1848
    %1913 = vst [vmem:[#allocation8 + $0x24] sm:$0xf] %v1849
    %1914 = vst [vmem:[#allocation8 + $0x28] sm:$0xf] %v1850
    %1915 = vst [vmem:[#allocation8 + $0x2c] sm:$0xf] %v1851
    %1916 = vst [vmem:[#allocation8 + $0x30] sm:$0xf] %v1852
    %1917 = vst [vmem:[#allocation8 + $0x34] sm:$0xf] %v1853
    %1918 = vst [vmem:[#allocation8 + $0x38] sm:$0xf] %v1854
    %1919 = vst [vmem:[#allocation8 + $0x3c] sm:$0xf] %v1855
    %1920 = vst [vmem:[#allocation8 + $0x40] sm:$0xf] %v1856
    %1921 = vst [vmem:[#allocation8 + $0x44] sm:$0xf] %v1857
    %1922 = vst [vmem:[#allocation8 + $0x48] sm:$0xf] %v1858
    %1923 = vst [vmem:[#allocation8 + $0x4c] sm:$0xf] %v1859
    %1924 = vst [vmem:[#allocation8 + $0x50] sm:$0xf] %v1860
    %1925 = vst [vmem:[#allocation8 + $0x54] sm:$0xf] %v1861
    %1926 = vst [vmem:[#allocation8 + $0x58] sm:$0xf] %v1862
    %1927 = vst [vmem:[#allocation8 + $0x5c] sm:$0xf] %v1863
    %1928 = vst [vmem:[#allocation8 + $0x60] sm:$0xf] %v1864
    %1929 = vst [vmem:[#allocation8 + $0x64] sm:$0xf] %v1865
    %1930 = vst [vmem:[#allocation8 + $0x68] sm:$0xf] %v1866
    %1931 = vst [vmem:[#allocation8 + $0x6c] sm:$0xf] %v1867
    %1932 = vst [vmem:[#allocation8 + $0x70] sm:$0xf] %v1868
    %1933 = vst [vmem:[#allocation8 + $0x74] sm:$0xf] %v1869
    %1934 = vst [vmem:[#allocation8 + $0x78] sm:$0xf] %v1870
    %1935 = vst [vmem:[#allocation8 + $0x7c] sm:$0xf] %v1871
    // Predicated region
    $region34: #{tpu_custom_call.1} parent=1 // pred_check
      _
    $region35: #{tpu_custom_call.1} parent=1 // pred_check_branch
      %1937 = sbr.rel (0) target = $region37
    $region36: #{tpu_custom_call.1} parent=1 // pred_region
      %s1939 = ssub.s32 2048, 2048
      %1940 = vsyncadd [#allocation4], %s1939
      %s1941 = sshll.u32 [#allocation7], 4
      %s1942 = int_to_ptr.vmem [resolvable:$true] %s1941
      %1947 = dma.vmem_to_hbm [thread:$0]  %s1942, 2048, %s6, [#allocation4], 64, 64, 4
    $region37: #{tpu_custom_call.1} parent=1 // pred_fallthru
      _
    // Predicated region
    $region38: #{tpu_custom_call.1} parent=1 // pred_check
      _
    $region39: #{tpu_custom_call.1} parent=1 // pred_check_branch
      %1949 = sbr.rel (0) target = $region41
    $region40: #{tpu_custom_call.1} parent=1 // pred_region
      %s1951 = ssub.s32 2048, 2048
      %1952 = vsyncadd [#allocation9], %s1951
      %s1953 = sshll.u32 [#allocation8], 4
      %s1954 = int_to_ptr.vmem [resolvable:$true] %s1953
      %1959 = dma.vmem_to_hbm [thread:$0]  %s1954, 2048, %s7, [#allocation9], 64, 64, 4
    $region41: #{tpu_custom_call.1} parent=1 // pred_fallthru
      _
    // Predicated region
    $region42: #{tpu_custom_call.1} parent=1 // pred_check
      _
    $region43: #{tpu_custom_call.1} parent=1 // pred_check_branch
      %1961 = sbr.rel (0) target = $region45
    $region44: #{tpu_custom_call.1} parent=1 // pred_region
      %1962 = dma.done [#allocation4], 2048
    $region45: #{tpu_custom_call.1} parent=1 // pred_fallthru
      _
    // Predicated region
    $region46: #{tpu_custom_call.1} parent=1 // pred_check
      _
    $region47: #{tpu_custom_call.1} parent=1 // pred_check_branch
      %1964 = sbr.rel (0) target = $region49
    $region48: #{tpu_custom_call.1} parent=1 // pred_region
      %1965 = dma.done [#allocation9], 2048
    $region49: #{tpu_custom_call.1} parent=1 // pred_fallthru
      _
    %1966 = vsyncpa [#allocation3], 1
    %1967 = vsyncpa [#allocation6], 1
    %1968 = vsyncpa [#allocation4], 1
    %1969 = vsyncpa [#allocation9], 1

</llo_original>
